<compile_context>
chip_gen: v6e
topology: v6e:2x2x1
jax: 0.10.0
libtpu: 0.0.40
codegen_flags: <defaults>
</compile_context>

<pallas_src>
import functools

import numpy as np
import jax
import jax.numpy as jnp
from jax.experimental import pallas as pl
from jax.experimental.pallas import tpu as pltpu


def igcnet_kernel(x_ref, ea_ref, idx_ref, slab_ref, out_ref, *, nt, hidden, num_layers):
    f32 = jnp.float32
    h = hidden
    x_t = x_ref[0]                         # (4*Nt, NN)  feature-major node states
    ea_t = ea_ref[0]                       # (2*Nt, EE)  feature-major edge attributes
    nn = x_t.shape[1]
    ee = ea_t.shape[1]

    # ---- unpack the single packed parameter slab (one DMA) with static slices ----
    slab = slab_ref[...]
    o = 0
    w1_xT  = slab[o:o + h, :4 * nt];      o += h        # (h, 4Nt)   = w1[:4Nt].T
    w1_eT  = slab[o:o + h, :2 * nt];      o += h        # (h, 2Nt)   = w1[4Nt:].T
    b1_c   = slab[o:o + h, :1];           o += h        # (h, 1)
    w2a_xT = slab[o:o + h, :4 * nt];      o += h        # (h, 4Nt)   = w2a[:4Nt].T
    w2a_gT = slab[o:o + h, :h];           o += h        # (h, h)     = w2a[4Nt:].T
    b2a_c  = slab[o:o + h, :1];           o += h        # (h, 1)
    w2b_wT = slab[o:o + 4 * nt, :h];      o += 4 * nt   # (4Nt, h)   rows [2Nt:) zero
    b2b_c  = slab[o:o + 4 * nt, :1];      o += 4 * nt   # (4Nt, 1)   rows [2Nt:) zero

    # ---- block-diagonal connectivity built in-kernel from O(E) indices ----
    idx = idx_ref[...]                     # (2, EE) int32, already offset per stacked graph
    src_row = idx[0:1, :]                  # (1, EE) global source node id per edge
    tgt_row = idx[1:2, :]                  # (1, EE) global target node id per edge
    node_ids = jax.lax.broadcasted_iota(jnp.int32, (nn, ee), 0)
    src_oh = (node_ids == src_row).astype(f32)      # (NN, EE) one-hot gather matrix
    tgt_msk = node_ids == tgt_row                   # (NN, EE) bool, row n marks edges into n

    # ---- loop-invariant hoists (JAX does not CSE broadcast_in_dim) ----
    ea_proj = jnp.dot(w1_eT, ea_t, preferred_element_type=f32) + b1_c      # (h, EE)
    b2a_full = jnp.broadcast_to(b2a_c, (h, nn))
    b2b_full = jnp.broadcast_to(b2b_c, (4 * nt, nn))
    # Sublane shift matrix: (shift @ x)[2Nt+k, :] = x[k, :], zero elsewhere.  Done on the
    # (nearly idle) MXU so the XLU stays free for the aggregation max-reduce and no
    # concatenate / roll appears inside the layer loop.
    rid = jax.lax.broadcasted_iota(jnp.int32, (4 * nt, 4 * nt), 0)
    cid = jax.lax.broadcasted_iota(jnp.int32, (4 * nt, 4 * nt), 1)
    shift = (rid == cid + 2 * nt).astype(f32)        # (4Nt, 4Nt)

    for _ in range(num_layers):            # the three IGConv applications share weights
        # message: relu(cat([x_src, edge_attr]) @ w1 + b1), kept in (h, EE) orientation.
        # The one-hot source gather commutes with the linear map: project nodes first,
        # then gather via one MXU matmul.
        y = jnp.dot(w1_xT, x_t, preferred_element_type=f32)                          # (h, NN)
        msg = jnp.maximum(jnp.dot(y, src_oh, preferred_element_type=f32) + ea_proj,
                          0.0)                                                       # (h, EE)

        # aggregate: per-target max over incoming edges, fill 0.
        # Valid because mlp1 ends in ReLU (msg >= 0) and the reference scatter-max fills
        # untargeted nodes with 0.  jnp.where (not mask*msg) avoids 0*inf -> NaN.
        cand = jnp.where(tgt_msk[None, :, :], msg[:, None, :], 0.0)                  # (h, NN, EE)
        # TODO(synk): for realistic N/E this (h, NN, EE) candidate must be E-tiled
        # (streamed edge chunks + running-max scratch), with smaller chunks on v7x (64 MiB VMEM).
        agg = jnp.max(cand, axis=-1)                                                 # (h, NN)

        # update: relu(cat([x, aggr]) @ w2a + b2a) @ w2b + b2b, then unit-ball clip.
        t = jnp.maximum(jnp.dot(w2a_xT, x_t, preferred_element_type=f32)
                        + jnp.dot(w2a_gT, agg, preferred_element_type=f32)
                        + b2a_full, 0.0)                                             # (h, NN)
        comb = jnp.dot(w2b_wT, t, preferred_element_type=f32) + b2b_full             # (4Nt, NN), rows [2Nt:) zero
        ss = jnp.sum(comb * comb, axis=0, keepdims=True)                             # (1, NN)
        # comb / max(1, ||comb||): rsqrt(0)=inf collapses to 1 via the min, matching the
        # reference's 0 / max(1, 0) = 0 for all-zero rows.
        comb = comb * jnp.minimum(jax.lax.rsqrt(ss), 1.0)
        # new x = [comb, x[:2*Nt]] (feature-major): zero-padded comb + sublane-shifted old x.
        x_t = comb + jnp.dot(shift, x_t, preferred_element_type=f32)

    out_ref[0] = x_t                       # single full-block, lane-dense store


def igcnet_forward(x0, edge_attr, edge_index, params, nt, *, num_layers=3):
    """x0: (B, N, 4*Nt), edge_attr: (B, E, 2*Nt), edge_index: (2, E) shared by the batch."""
    batch, n_nodes, feat = x0.shape
    assert feat == 4 * nt
    n_edges = edge_attr.shape[1]
    w1, b1, w2a, b2a, w2b, b2b = params
    hidden = w1.shape[1]

    # Fold the batch into few grid steps: 2 steps keep both v7x TensorCores busy and are
    # near-free on v5e/v6e; each step holds G graphs stacked along the node/edge axis.
    num_steps = 2 if (batch % 2 == 0 and batch > 1) else 1
    g = batch // num_steps
    nn, ee = g * n_nodes, g * n_edges

    # ---- block-diagonal edge endpoint ids (graphs share edge_index -> same for all steps) ----
    offs = (jnp.arange(g, dtype=jnp.int32) * n_nodes)[:, None]               # (G, 1)
    src_g = (edge_index[0].astype(jnp.int32)[None, :] + offs).reshape(1, ee)
    tgt_g = (edge_index[1].astype(jnp.int32)[None, :] + offs).reshape(1, ee)
    idx = jnp.concatenate([src_g, tgt_g], axis=0)                            # (2, EE) int32

    # ---- pack all weights/biases (pre-transposed, pre-concatenated, zero-padded) into one slab ----
    width = 4 * nt
    pad_cols = lambda a: jnp.pad(a, ((0, 0), (0, width - a.shape[1])))
    w2b_wide = jnp.pad(w2b, ((0, 0), (0, 4 * nt - w2b.shape[1])))            # (h, 4Nt), cols [2Nt:) zero
    b2b_wide = jnp.pad(b2b, ((0, 0), (0, 4 * nt - b2b.shape[1])))            # (1, 4Nt)
    slab = jnp.concatenate([
        pad_cols(w1[:4 * nt].T),       # w1_xT   (h, 4Nt)
        pad_cols(w1[4 * nt:].T),       # w1_eT   (h, 2Nt)
        pad_cols(b1.T),                # b1_col  (h, 1)
        pad_cols(w2a[:4 * nt].T),      # w2a_xT  (h, 4Nt)
        pad_cols(w2a[4 * nt:].T),      # w2a_gT  (h, h)
        pad_cols(b2a.T),               # b2a_col (h, 1)
        pad_cols(w2b_wide.T),          # w2b_wT  (4Nt, h)
        pad_cols(b2b_wide.T),          # b2b_col (4Nt, 1)
    ], axis=0).astype(jnp.float32)

    # ---- per-step feature-major blocks: features on sublanes, nodes/edges on lanes ----
    x_fm = x0.reshape(num_steps, nn, 4 * nt).transpose(0, 2, 1)              # (S, 4Nt, NN)
    ea_fm = edge_attr.reshape(num_steps, ee, 2 * nt).transpose(0, 2, 1)      # (S, 2Nt, EE)

    # advisory cost estimate (tiny here, but keeps XLA scheduling sane as sizes grow)
    mm_per_layer = (2 * hidden * 4 * nt * nn + 2 * hidden * nn * ee
                    + 2 * hidden * 4 * nt * nn + 2 * hidden * hidden * nn
                    + 2 * 4 * nt * hidden * nn + 2 * 4 * nt * 4 * nt * nn
                    + 2 * hidden * nn * ee)
    flops = num_steps * (num_layers * mm_per_layer + 2 * hidden * 2 * nt * ee)
    bytes_accessed = 4 * (x_fm.size + ea_fm.size + idx.size + slab.size
                          + num_steps * 4 * nt * nn)

    kernel = functools.partial(igcnet_kernel, nt=nt, hidden=hidden, num_layers=num_layers)
    out_fm = pl.pallas_call(
        kernel,
        out_shape=jax.ShapeDtypeStruct((num_steps, 4 * nt, nn), jnp.float32),
        grid_spec=pltpu.PrefetchScalarGridSpec(
            num_scalar_prefetch=0,
            grid=(num_steps,),
            in_specs=[
                pl.BlockSpec((1, 4 * nt, nn), lambda s: (s, 0, 0)),
                pl.BlockSpec((1, 2 * nt, ee), lambda s: (s, 0, 0)),
                pl.BlockSpec((2, ee), lambda s: (0, 0)),
                pl.BlockSpec(slab.shape, lambda s: (0, 0)),
            ],
            out_specs=pl.BlockSpec((1, 4 * nt, nn), lambda s: (s, 0, 0)),
        ),
        compiler_params=pltpu.CompilerParams(
            dimension_semantics=("parallel",),
            vmem_limit_bytes=32 * 1024 * 1024,
        ),
        cost_estimate=pl.CostEstimate(flops=flops, transcendentals=num_steps * num_layers * nn,
                                      bytes_accessed=bytes_accessed),
    )(x_fm, ea_fm, idx, slab)

    return out_fm.transpose(0, 2, 1).reshape(batch, n_nodes, 4 * nt)


def igcnet_reference(x0, edge_attr, edge_index, params, nt, num_layers=3):
    """Pure-JAX single-graph reference mirroring the PyTorch/PyG forward (aggr='max', fill 0)."""
    w1, b1, w2a, b2a, w2b, b2b = params
    src, tgt = edge_index[0], edge_index[1]
    n_nodes = x0.shape[0]
    x = x0
    for _ in range(num_layers):
        xj = x[src]
        msg = jnp.maximum(jnp.concatenate([xj, edge_attr], axis=1) @ w1 + b1, 0.0)
        aggr = jnp.zeros((n_nodes, msg.shape[1]), jnp.float32).at[tgt].max(msg)
        h = jnp.concatenate([x, aggr], axis=1)
        t = jnp.maximum(h @ w2a + b2a, 0.0)
        comb = t @ w2b + b2b
        nor = jnp.sqrt(jnp.sum(comb * comb, axis=1, keepdims=True))
        comb = comb / jnp.maximum(1.0, nor)
        x = jnp.concatenate([comb, x[:, :2 * nt]], axis=1)
    return x


if __name__ == "__main__":
    Nt = 2            # train_config.Nt
    N = 8             # nodes per graph
    B = 4             # graphs (folded into grid=(2,) with 2 graphs per step)

    # Small directed graph shared by the batch: node i sends to (i+1)%N and (i+3)%N
    # -> E = 16, every node has in-degree 2 (no isolated targets).
    src = np.concatenate([np.arange(N), np.arange(N)])
    tgt = np.concatenate([(np.arange(N) + 1) % N, (np.arange(N) + 3) % N])
    edge_index = jnp.asarray(np.stack([src, tgt]), dtype=jnp.int32)          # (2, 16)
    E = edge_index.shape[1]

    key = jax.random.PRNGKey(0)
    k = jax.random.split(key, 8)
    x0 = jax.random.normal(k[0], (B, N, 4 * Nt), jnp.float32)                # data.x
    edge_attr = jax.random.normal(k[1], (B, E, 2 * Nt), jnp.float32)         # data.edge_attr

    # Deterministic synthetic parameters (PyTorch Linear shapes, stored as (in, out)).
    def lin(kw, kb, fan_in, fan_out):
        s = 1.0 / np.sqrt(fan_in)
        w = jax.random.uniform(kw, (fan_in, fan_out), jnp.float32, -s, s)
        b = jax.random.uniform(kb, (1, fan_out), jnp.float32, -s, s)
        return w, b

    w1, b1 = lin(k[2], k[3], 6 * Nt, 4)            # mlp1: Lin(6*Nt, 4) + ReLU
    w2a, b2a = lin(k[4], k[5], 4 + 4 * Nt, 4)      # mlp2 stage 1: Lin(4+4*Nt, 4) + ReLU
    w2b, b2b = lin(k[6], k[7], 4, 2 * Nt)          # mlp2 stage 2: Lin(4, 2*Nt)
    params = (w1, b1, w2a, b2a, w2b, b2b)

    out = igcnet_forward(x0, edge_attr, edge_index, params, Nt)
    out = jax.block_until_ready(out)

    ref = jax.vmap(lambda xg, eg: igcnet_reference(xg, eg, edge_index, params, Nt))(x0, edge_attr)
    np.testing.assert_allclose(np.asarray(out), np.asarray(ref), rtol=1e-4, atol=1e-5)

    print("KERNEL_OK")
</pallas_src>

<mosaic_0001>
module attributes {stable_mosaic.version = 11 : i64} {
  func.func @igcnet_kernel(%arg0: i32, %arg1: memref<1x8x16xf32, #tpu.memory_space<vmem>>, %arg2: memref<1x4x32xf32, #tpu.memory_space<vmem>>, %arg3: memref<2x32xi32, #tpu.memory_space<vmem>>, %arg4: memref<40x8xf32, #tpu.memory_space<vmem>>, %arg5: memref<1x8x16xf32, #tpu.memory_space<vmem>>) attributes {dimension_semantics = [#tpu.dimension_semantics<parallel>], iteration_bounds = array<i64: 2>, scalar_prefetch = 0 : i64, scratch_operands = 0 : i64, tpu.core_type = #tpu.core_type<tc>, window_params = [{transform_indices = @transform_0, window_bounds = array<i64: 1, 8, 16>}, {transform_indices = @transform_1, window_bounds = array<i64: 1, 4, 32>}, {pipeline_mode = #tpu.pipeline_mode<synchronous>, transform_indices = @transform_2, window_bounds = array<i64: 2, 32>}, {pipeline_mode = #tpu.pipeline_mode<synchronous>, transform_indices = @transform_3, window_bounds = array<i64: 40, 8>}, {transform_indices = @transform_4, window_bounds = array<i64: 1, 8, 16>}]} {
    %c0 = arith.constant 0 : index
    %c0_0 = arith.constant 0 : index
    %c0_1 = arith.constant 0 : index
    %0 = vector.load %arg1[%c0, %c0_0, %c0_1] : memref<1x8x16xf32, #tpu.memory_space<vmem>>, vector<1x8x16xf32>
    %1 = vector.shape_cast %0 : vector<1x8x16xf32> to vector<8x16xf32>
    %c0_2 = arith.constant 0 : index
    %c0_3 = arith.constant 0 : index
    %c0_4 = arith.constant 0 : index
    %2 = vector.load %arg2[%c0_2, %c0_3, %c0_4] : memref<1x4x32xf32, #tpu.memory_space<vmem>>, vector<1x4x32xf32>
    %3 = vector.shape_cast %2 : vector<1x4x32xf32> to vector<4x32xf32>
    %c0_5 = arith.constant 0 : index
    %c0_6 = arith.constant 0 : index
    %4 = vector.load %arg4[%c0_5, %c0_6] : memref<40x8xf32, #tpu.memory_space<vmem>>, vector<40x8xf32>
    %5 = vector.extract_strided_slice %4 {offsets = [0, 0], sizes = [4, 8], strides = [1, 1]} : vector<40x8xf32> to vector<4x8xf32>
    %6 = vector.extract_strided_slice %4 {offsets = [4, 0], sizes = [4, 4], strides = [1, 1]} : vector<40x8xf32> to vector<4x4xf32>
    %7 = vector.extract_strided_slice %4 {offsets = [8, 0], sizes = [4, 1], strides = [1, 1]} : vector<40x8xf32> to vector<4x1xf32>
    %8 = vector.extract_strided_slice %4 {offsets = [12, 0], sizes = [4, 8], strides = [1, 1]} : vector<40x8xf32> to vector<4x8xf32>
    %9 = vector.extract_strided_slice %4 {offsets = [16, 0], sizes = [4, 4], strides = [1, 1]} : vector<40x8xf32> to vector<4x4xf32>
    %10 = vector.extract_strided_slice %4 {offsets = [20, 0], sizes = [4, 1], strides = [1, 1]} : vector<40x8xf32> to vector<4x1xf32>
    %11 = vector.extract_strided_slice %4 {offsets = [24, 0], sizes = [8, 4], strides = [1, 1]} : vector<40x8xf32> to vector<8x4xf32>
    %12 = vector.extract_strided_slice %4 {offsets = [32, 0], sizes = [8, 1], strides = [1, 1]} : vector<40x8xf32> to vector<8x1xf32>
    %c0_7 = arith.constant 0 : index
    %c0_8 = arith.constant 0 : index
    %13 = vector.load %arg3[%c0_7, %c0_8] : memref<2x32xi32, #tpu.memory_space<vmem>>, vector<2x32xi32>
    %14 = vector.extract_strided_slice %13 {offsets = [0, 0], sizes = [1, 32], strides = [1, 1]} : vector<2x32xi32> to vector<1x32xi32>
    %15 = vector.extract_strided_slice %13 {offsets = [1, 0], sizes = [1, 32], strides = [1, 1]} : vector<2x32xi32> to vector<1x32xi32>
    %16 = tpu.iota {dimensions = array<i32: 0>} : vector<16x32xi32>
    %17 = vector.broadcast %14 : vector<1x32xi32> to vector<16x32xi32>
    %18 = arith.cmpi eq, %16, %17 : vector<16x32xi32>
    %19 = arith.extui %18 : vector<16x32xi1> to vector<16x32xi32>
    %20 = arith.sitofp %19 : vector<16x32xi32> to vector<16x32xf32>
    %21 = vector.broadcast %15 : vector<1x32xi32> to vector<16x32xi32>
    %22 = arith.cmpi eq, %16, %21 : vector<16x32xi32>
    %cst = arith.constant dense<0.000000e+00> : vector<4x32xf32>
    %23 = tpu.matmul %6, %3, %cst {dimension_numbers = #tpu.dot_dimension_numbers<[1], [0], [0], [1], [0, 0, 1, 1], [], []>} : vector<4x4xf32>, vector<4x32xf32>, vector<4x32xf32> -> vector<4x32xf32>
    %24 = vector.broadcast %7 : vector<4x1xf32> to vector<4x32xf32>
    %25 = arith.addf %23, %24 : vector<4x32xf32>
    %26 = vector.shape_cast %10 : vector<4x1xf32> to vector<4x1xf32>
    %27 = vector.broadcast %26 : vector<4x1xf32> to vector<4x16xf32>
    %28 = vector.shape_cast %12 : vector<8x1xf32> to vector<8x1xf32>
    %29 = vector.broadcast %28 : vector<8x1xf32> to vector<8x16xf32>
    %30 = tpu.iota {dimensions = array<i32: 0>} : vector<8x8xi32>
    %31 = tpu.iota {dimensions = array<i32: 1>} : vector<8x8xi32>
    %c4_i32 = arith.constant 4 : i32
    %32 = vector.broadcast %c4_i32 : i32 to vector<8x8xi32>
    %33 = arith.addi %31, %32 : vector<8x8xi32>
    %34 = arith.cmpi eq, %30, %33 : vector<8x8xi32>
    %35 = arith.extui %34 : vector<8x8xi1> to vector<8x8xi32>
    %36 = arith.sitofp %35 : vector<8x8xi32> to vector<8x8xf32>
    %cst_9 = arith.constant dense<0.000000e+00> : vector<4x16xf32>
    %37 = tpu.matmul %5, %1, %cst_9 {dimension_numbers = #tpu.dot_dimension_numbers<[1], [0], [0], [1], [0, 0, 1, 1], [], []>} : vector<4x8xf32>, vector<8x16xf32>, vector<4x16xf32> -> vector<4x16xf32>
    %cst_10 = arith.constant dense<0.000000e+00> : vector<4x32xf32>
    %38 = tpu.matmul %37, %20, %cst_10 {dimension_numbers = #tpu.dot_dimension_numbers<[1], [0], [0], [1], [0, 0, 1, 1], [], []>} : vector<4x16xf32>, vector<16x32xf32>, vector<4x32xf32> -> vector<4x32xf32>
    %39 = arith.addf %38, %25 : vector<4x32xf32>
    %cst_11 = arith.constant 0.000000e+00 : f32
    %40 = vector.broadcast %cst_11 : f32 to vector<4x32xf32>
    %41 = arith.maximumf %39, %40 : vector<4x32xf32>
    %42 = vector.shape_cast %22 : vector<16x32xi1> to vector<1x16x32xi1>
    %43 = vector.shape_cast %41 : vector<4x32xf32> to vector<4x1x32xf32>
    %cst_12 = arith.constant 0.000000e+00 : f32
    %44 = vector.shape_cast %42 : vector<1x16x32xi1> to vector<1x16x32xi1>
    %45 = vector.broadcast %44 : vector<1x16x32xi1> to vector<4x16x32xi1>
    %46 = vector.shape_cast %43 : vector<4x1x32xf32> to vector<4x1x32xf32>
    %47 = vector.broadcast %46 : vector<4x1x32xf32> to vector<4x16x32xf32>
    %48 = vector.broadcast %cst_12 : f32 to vector<4x16x32xf32>
    %49 = arith.select %45, %47, %48 : vector<4x16x32xi1>, vector<4x16x32xf32>
    %cst_13 = arith.constant dense<0xFF800000> : vector<4x16xf32>
    %50 = vector.multi_reduction <maximumf>, %49, %cst_13 [2] : vector<4x16x32xf32> to vector<4x16xf32>
    %cst_14 = arith.constant dense<0.000000e+00> : vector<4x16xf32>
    %51 = tpu.matmul %8, %1, %cst_14 {dimension_numbers = #tpu.dot_dimension_numbers<[1], [0], [0], [1], [0, 0, 1, 1], [], []>} : vector<4x8xf32>, vector<8x16xf32>, vector<4x16xf32> -> vector<4x16xf32>
    %cst_15 = arith.constant dense<0.000000e+00> : vector<4x16xf32>
    %52 = tpu.matmul %9, %50, %cst_15 {dimension_numbers = #tpu.dot_dimension_numbers<[1], [0], [0], [1], [0, 0, 1, 1], [], []>} : vector<4x4xf32>, vector<4x16xf32>, vector<4x16xf32> -> vector<4x16xf32>
    %53 = arith.addf %51, %52 : vector<4x16xf32>
    %54 = arith.addf %53, %27 : vector<4x16xf32>
    %cst_16 = arith.constant 0.000000e+00 : f32
    %55 = vector.broadcast %cst_16 : f32 to vector<4x16xf32>
    %56 = arith.maximumf %54, %55 : vector<4x16xf32>
    %cst_17 = arith.constant dense<0.000000e+00> : vector<8x16xf32>
    %57 = tpu.matmul %11, %56, %cst_17 {dimension_numbers = #tpu.dot_dimension_numbers<[1], [0], [0], [1], [0, 0, 1, 1], [], []>} : vector<8x4xf32>, vector<4x16xf32>, vector<8x16xf32> -> vector<8x16xf32>
    %58 = arith.addf %57, %29 : vector<8x16xf32>
    %59 = arith.mulf %58, %58 : vector<8x16xf32>
    %cst_18 = arith.constant dense<0.000000e+00> : vector<16xf32>
    %60 = vector.multi_reduction <add>, %59, %cst_18 [0] : vector<8x16xf32> to vector<16xf32>
    %61 = vector.shape_cast %60 : vector<16xf32> to vector<1x16xf32>
    %62 = math.rsqrt %61 : vector<1x16xf32>
    %cst_19 = arith.constant 1.000000e+00 : f32
    %63 = vector.broadcast %cst_19 : f32 to vector<1x16xf32>
    %64 = arith.minimumf %62, %63 : vector<1x16xf32>
    %65 = vector.broadcast %64 : vector<1x16xf32> to vector<8x16xf32>
    %66 = arith.mulf %58, %65 : vector<8x16xf32>
    %cst_20 = arith.constant dense<0.000000e+00> : vector<8x16xf32>
    %67 = tpu.matmul %36, %1, %cst_20 {dimension_numbers = #tpu.dot_dimension_numbers<[1], [0], [0], [1], [0, 0, 1, 1], [], []>} : vector<8x8xf32>, vector<8x16xf32>, vector<8x16xf32> -> vector<8x16xf32>
    %68 = arith.addf %66, %67 : vector<8x16xf32>
    %cst_21 = arith.constant dense<0.000000e+00> : vector<4x16xf32>
    %69 = tpu.matmul %5, %68, %cst_21 {dimension_numbers = #tpu.dot_dimension_numbers<[1], [0], [0], [1], [0, 0, 1, 1], [], []>} : vector<4x8xf32>, vector<8x16xf32>, vector<4x16xf32> -> vector<4x16xf32>
    %cst_22 = arith.constant dense<0.000000e+00> : vector<4x32xf32>
    %70 = tpu.matmul %69, %20, %cst_22 {dimension_numbers = #tpu.dot_dimension_numbers<[1], [0], [0], [1], [0, 0, 1, 1], [], []>} : vector<4x16xf32>, vector<16x32xf32>, vector<4x32xf32> -> vector<4x32xf32>
    %71 = arith.addf %70, %25 : vector<4x32xf32>
    %cst_23 = arith.constant 0.000000e+00 : f32
    %72 = vector.broadcast %cst_23 : f32 to vector<4x32xf32>
    %73 = arith.maximumf %71, %72 : vector<4x32xf32>
    %74 = vector.shape_cast %22 : vector<16x32xi1> to vector<1x16x32xi1>
    %75 = vector.shape_cast %73 : vector<4x32xf32> to vector<4x1x32xf32>
    %cst_24 = arith.constant 0.000000e+00 : f32
    %76 = vector.shape_cast %74 : vector<1x16x32xi1> to vector<1x16x32xi1>
    %77 = vector.broadcast %76 : vector<1x16x32xi1> to vector<4x16x32xi1>
    %78 = vector.shape_cast %75 : vector<4x1x32xf32> to vector<4x1x32xf32>
    %79 = vector.broadcast %78 : vector<4x1x32xf32> to vector<4x16x32xf32>
    %80 = vector.broadcast %cst_24 : f32 to vector<4x16x32xf32>
    %81 = arith.select %77, %79, %80 : vector<4x16x32xi1>, vector<4x16x32xf32>
    %cst_25 = arith.constant dense<0xFF800000> : vector<4x16xf32>
    %82 = vector.multi_reduction <maximumf>, %81, %cst_25 [2] : vector<4x16x32xf32> to vector<4x16xf32>
    %cst_26 = arith.constant dense<0.000000e+00> : vector<4x16xf32>
    %83 = tpu.matmul %8, %68, %cst_26 {dimension_numbers = #tpu.dot_dimension_numbers<[1], [0], [0], [1], [0, 0, 1, 1], [], []>} : vector<4x8xf32>, vector<8x16xf32>, vector<4x16xf32> -> vector<4x16xf32>
    %cst_27 = arith.constant dense<0.000000e+00> : vector<4x16xf32>
    %84 = tpu.matmul %9, %82, %cst_27 {dimension_numbers = #tpu.dot_dimension_numbers<[1], [0], [0], [1], [0, 0, 1, 1], [], []>} : vector<4x4xf32>, vector<4x16xf32>, vector<4x16xf32> -> vector<4x16xf32>
    %85 = arith.addf %83, %84 : vector<4x16xf32>
    %86 = arith.addf %85, %27 : vector<4x16xf32>
    %cst_28 = arith.constant 0.000000e+00 : f32
    %87 = vector.broadcast %cst_28 : f32 to vector<4x16xf32>
    %88 = arith.maximumf %86, %87 : vector<4x16xf32>
    %cst_29 = arith.constant dense<0.000000e+00> : vector<8x16xf32>
    %89 = tpu.matmul %11, %88, %cst_29 {dimension_numbers = #tpu.dot_dimension_numbers<[1], [0], [0], [1], [0, 0, 1, 1], [], []>} : vector<8x4xf32>, vector<4x16xf32>, vector<8x16xf32> -> vector<8x16xf32>
    %90 = arith.addf %89, %29 : vector<8x16xf32>
    %91 = arith.mulf %90, %90 : vector<8x16xf32>
    %cst_30 = arith.constant dense<0.000000e+00> : vector<16xf32>
    %92 = vector.multi_reduction <add>, %91, %cst_30 [0] : vector<8x16xf32> to vector<16xf32>
    %93 = vector.shape_cast %92 : vector<16xf32> to vector<1x16xf32>
    %94 = math.rsqrt %93 : vector<1x16xf32>
    %cst_31 = arith.constant 1.000000e+00 : f32
    %95 = vector.broadcast %cst_31 : f32 to vector<1x16xf32>
    %96 = arith.minimumf %94, %95 : vector<1x16xf32>
    %97 = vector.broadcast %96 : vector<1x16xf32> to vector<8x16xf32>
    %98 = arith.mulf %90, %97 : vector<8x16xf32>
    %cst_32 = arith.constant dense<0.000000e+00> : vector<8x16xf32>
    %99 = tpu.matmul %36, %68, %cst_32 {dimension_numbers = #tpu.dot_dimension_numbers<[1], [0], [0], [1], [0, 0, 1, 1], [], []>} : vector<8x8xf32>, vector<8x16xf32>, vector<8x16xf32> -> vector<8x16xf32>
    %100 = arith.addf %98, %99 : vector<8x16xf32>
    %cst_33 = arith.constant dense<0.000000e+00> : vector<4x16xf32>
    %101 = tpu.matmul %5, %100, %cst_33 {dimension_numbers = #tpu.dot_dimension_numbers<[1], [0], [0], [1], [0, 0, 1, 1], [], []>} : vector<4x8xf32>, vector<8x16xf32>, vector<4x16xf32> -> vector<4x16xf32>
    %cst_34 = arith.constant dense<0.000000e+00> : vector<4x32xf32>
    %102 = tpu.matmul %101, %20, %cst_34 {dimension_numbers = #tpu.dot_dimension_numbers<[1], [0], [0], [1], [0, 0, 1, 1], [], []>} : vector<4x16xf32>, vector<16x32xf32>, vector<4x32xf32> -> vector<4x32xf32>
    %103 = arith.addf %102, %25 : vector<4x32xf32>
    %cst_35 = arith.constant 0.000000e+00 : f32
    %104 = vector.broadcast %cst_35 : f32 to vector<4x32xf32>
    %105 = arith.maximumf %103, %104 : vector<4x32xf32>
    %106 = vector.shape_cast %22 : vector<16x32xi1> to vector<1x16x32xi1>
    %107 = vector.shape_cast %105 : vector<4x32xf32> to vector<4x1x32xf32>
    %cst_36 = arith.constant 0.000000e+00 : f32
    %108 = vector.shape_cast %106 : vector<1x16x32xi1> to vector<1x16x32xi1>
    %109 = vector.broadcast %108 : vector<1x16x32xi1> to vector<4x16x32xi1>
    %110 = vector.shape_cast %107 : vector<4x1x32xf32> to vector<4x1x32xf32>
    %111 = vector.broadcast %110 : vector<4x1x32xf32> to vector<4x16x32xf32>
    %112 = vector.broadcast %cst_36 : f32 to vector<4x16x32xf32>
    %113 = arith.select %109, %111, %112 : vector<4x16x32xi1>, vector<4x16x32xf32>
    %cst_37 = arith.constant dense<0xFF800000> : vector<4x16xf32>
    %114 = vector.multi_reduction <maximumf>, %113, %cst_37 [2] : vector<4x16x32xf32> to vector<4x16xf32>
    %cst_38 = arith.constant dense<0.000000e+00> : vector<4x16xf32>
    %115 = tpu.matmul %8, %100, %cst_38 {dimension_numbers = #tpu.dot_dimension_numbers<[1], [0], [0], [1], [0, 0, 1, 1], [], []>} : vector<4x8xf32>, vector<8x16xf32>, vector<4x16xf32> -> vector<4x16xf32>
    %cst_39 = arith.constant dense<0.000000e+00> : vector<4x16xf32>
    %116 = tpu.matmul %9, %114, %cst_39 {dimension_numbers = #tpu.dot_dimension_numbers<[1], [0], [0], [1], [0, 0, 1, 1], [], []>} : vector<4x4xf32>, vector<4x16xf32>, vector<4x16xf32> -> vector<4x16xf32>
    %117 = arith.addf %115, %116 : vector<4x16xf32>
    %118 = arith.addf %117, %27 : vector<4x16xf32>
    %cst_40 = arith.constant 0.000000e+00 : f32
    %119 = vector.broadcast %cst_40 : f32 to vector<4x16xf32>
    %120 = arith.maximumf %118, %119 : vector<4x16xf32>
    %cst_41 = arith.constant dense<0.000000e+00> : vector<8x16xf32>
    %121 = tpu.matmul %11, %120, %cst_41 {dimension_numbers = #tpu.dot_dimension_numbers<[1], [0], [0], [1], [0, 0, 1, 1], [], []>} : vector<8x4xf32>, vector<4x16xf32>, vector<8x16xf32> -> vector<8x16xf32>
    %122 = arith.addf %121, %29 : vector<8x16xf32>
    %123 = arith.mulf %122, %122 : vector<8x16xf32>
    %cst_42 = arith.constant dense<0.000000e+00> : vector<16xf32>
    %124 = vector.multi_reduction <add>, %123, %cst_42 [0] : vector<8x16xf32> to vector<16xf32>
    %125 = vector.shape_cast %124 : vector<16xf32> to vector<1x16xf32>
    %126 = math.rsqrt %125 : vector<1x16xf32>
    %cst_43 = arith.constant 1.000000e+00 : f32
    %127 = vector.broadcast %cst_43 : f32 to vector<1x16xf32>
    %128 = arith.minimumf %126, %127 : vector<1x16xf32>
    %129 = vector.broadcast %128 : vector<1x16xf32> to vector<8x16xf32>
    %130 = arith.mulf %122, %129 : vector<8x16xf32>
    %cst_44 = arith.constant dense<0.000000e+00> : vector<8x16xf32>
    %131 = tpu.matmul %36, %100, %cst_44 {dimension_numbers = #tpu.dot_dimension_numbers<[1], [0], [0], [1], [0, 0, 1, 1], [], []>} : vector<8x8xf32>, vector<8x16xf32>, vector<8x16xf32> -> vector<8x16xf32>
    %132 = arith.addf %130, %131 : vector<8x16xf32>
    %c0_45 = arith.constant 0 : index
    %c0_46 = arith.constant 0 : index
    %c0_47 = arith.constant 0 : index
    %133 = vector.load %arg5[%c0_45, %c0_46, %c0_47] : memref<1x8x16xf32, #tpu.memory_space<vmem>>, vector<1x8x16xf32>
    %134 = vector.shape_cast %133 : vector<1x8x16xf32> to vector<8x16xf32>
    %135 = vector.shape_cast %132 : vector<8x16xf32> to vector<1x8x16xf32>
    tpu.vector_store %arg5[%c0_45, %c0_46, %c0_47], %135 {strides = array<i32>} : memref<1x8x16xf32, #tpu.memory_space<vmem>>, vector<1x8x16xf32>,
    return
  }
  func.func @transform_0(%arg0: i32) -> (i32, i32, i32) {
    %c0_i32 = arith.constant 0 : i32
    %c0_i32_0 = arith.constant 0 : i32
    %c0_i32_1 = arith.constant 0 : i32
    return %arg0, %c0_i32, %c0_i32_0 : i32, i32, i32
  }
  func.func @transform_1(%arg0: i32) -> (i32, i32, i32) {
    %c0_i32 = arith.constant 0 : i32
    %c0_i32_0 = arith.constant 0 : i32
    %c0_i32_1 = arith.constant 0 : i32
    return %arg0, %c0_i32, %c0_i32_0 : i32, i32, i32
  }
  func.func @transform_2(%arg0: i32) -> (i32, i32) {
    %c0_i32 = arith.constant 0 : i32
    %c0_i32_0 = arith.constant 0 : i32
    %c0_i32_1 = arith.constant 0 : i32
    return %c0_i32, %c0_i32_0 : i32, i32
  }
  func.func @transform_3(%arg0: i32) -> (i32, i32) {
    %c0_i32 = arith.constant 0 : i32
    %c0_i32_0 = arith.constant 0 : i32
    %c0_i32_1 = arith.constant 0 : i32
    return %c0_i32, %c0_i32_0 : i32, i32
  }
  func.func @transform_4(%arg0: i32) -> (i32, i32, i32) {
    %c0_i32 = arith.constant 0 : i32
    %c0_i32_0 = arith.constant 0 : i32
    %c0_i32_1 = arith.constant 0 : i32
    return %arg0, %c0_i32, %c0_i32_0 : i32, i32, i32
  }
}

</mosaic_0001>

<llo_original>
// kernel: tpu_custom_call.1
$region0: #{tpu_custom_call.1}
  #allocation0 [shape = 'u32[]', space=smem, size = 0x4, offset = 0x4, fixed_abs, tag = 'smem constant byte address 0x4 - core index']
  #allocation1 [shape = 'u32[144,128]{1,0:T(1,128)}', space=vmem, size = 0x12000, scoped, tag = 'internal scratch']
  %s0 = inlined_call_operand.vmem [shape: f32[2,8,16], index: 0, kind: input, shape index: {}]
  %s1 = inlined_call_operand.vmem [shape: f32[2,4,32], index: 1, kind: input, shape index: {}]
  %s2 = inlined_call_operand.vmem [shape: s32[2,32], index: 2, kind: input, shape index: {}]
  %s3 = inlined_call_operand.vmem [shape: f32[40,8], index: 3, kind: input, shape index: {}]
  %s4 = inlined_call_operand.hbm [shape: f32[2,8,16], index: 4, kind: output, shape index: {}]
  %s5 = sld [smem:[#allocation0]]
  $region49: #{tpu_custom_call.1} parent=0
    _
  %s7 = ssub.s32 1, %s5
  %s8 = scalar_select 0, %s7, %s5
  $region1: #{tpu_custom_call.1} parent=0
    #allocation2 [shape = 'u8[8192]{0}', space=vmem, size = 0x2000, scoped, tag = 'output window, operand 0']
    #allocation3 [shape = 's32[2]{0}', space=sflag, size = 0x8, scoped, tag = 'scoped memory for tpu_custom_call.1']
    %9 = vsyncpa [#allocation3], 0
    %s10 = scalar_lea.sflag [#allocation3], 1
    %11 = vsyncpa %s10, 0
    loop: start=0, step=1, limit=4
    $region2: #{tpu_custom_call.1} parent=1 // loop_pre_header
      _
    $region3: #{tpu_custom_call.1} parent=1 // loop_header
      %s13 = sphi 0, %s17
      %p14 = scmp.ge.s32.totalorder %s13, 4
      %s23 = sphi 0, %s25
      %s26 = sphi 0, %s23
      %s27 = sphi 0, %s26
      %s43 = sphi 0, %s27
      %s49 = sphi 0, %s51
      %s52 = sphi 0, %s49
      %s53 = sphi 0, %s52
      %s69 = sphi 0, %s53
      %s73 = sphi 0, %s73
      %s75 = sphi 0, %s73
      %s76 = sphi 0, %s75
      %s90 = sphi 0, %s76
      %s94 = sphi 0, %s94
      %s96 = sphi 0, %s94
      %s97 = sphi 0, %s96
      %s111 = sphi 0, %s97
      %s117 = sphi 0, %s119
      %s120 = sphi 0, %s117
      %s121 = sphi 0, %s120
      %s137 = sphi 0, %s121
    $region4: #{tpu_custom_call.1} parent=1 // loop_header_branch
      %16 = sbr.rel (%p14) target = $region8
    $region5: #{tpu_custom_call.1} parent=1 // loop_body
      %s18 = ssub.s32 %s13, 1
      %s19 = ssub.s32 %s13, 2
      %s20 = sadd.s32 %s13, 1
      %s21 = ssub.s32 %s13, %s20
      %p22 = scmp.eq.s32.totalorder %s21, 0
      %s24 = sadd.s32 %s23, 1
      %s25 = scalar_select %p22, %s23, %s24
      %p28 = pneg %p22
      %p29 = scmp.eq.s32.totalorder %s13, 1
      %p30 = por %p28, %p29
      %p31 = scmp.ne.s32.totalorder %s23, %s26
      %p32 = scmp.eq.s32.totalorder %s13, 0
      %p33 = por %p31, %p32
      %p34 = scmp.ne.s32.totalorder %s23, %s26
      %p35 = scmp.eq.s32.totalorder %s18, 1
      %p36 = por %p34, %p35
      %p37 = scmp.ne.s32.totalorder %s26, %s27
      %p38 = scmp.eq.s32.totalorder %s18, 0
      %p39 = por %p37, %p38
      %p40 = scmp.ne.s32.totalorder %s26, %s27
      %p41 = scmp.eq.s32.totalorder %s19, 1
      %p42 = por %p40, %p41
      %p44 = scmp.ne.s32.totalorder %s27, %s43
      %p45 = scmp.eq.s32.totalorder %s19, 0
      %p46 = por %p44, %p45
      %s47 = ssub.s32 %s13, %s20
      %p48 = scmp.eq.s32.totalorder %s47, 0
      %s50 = sadd.s32 %s49, 1
      %s51 = scalar_select %p48, %s49, %s50
      %p54 = pneg %p48
      %p55 = scmp.eq.s32.totalorder %s13, 1
      %p56 = por %p54, %p55
      %p57 = scmp.ne.s32.totalorder %s49, %s52
      %p58 = scmp.eq.s32.totalorder %s13, 0
      %p59 = por %p57, %p58
      %p60 = scmp.ne.s32.totalorder %s49, %s52
      %p61 = scmp.eq.s32.totalorder %s18, 1
      %p62 = por %p60, %p61
      %p63 = scmp.ne.s32.totalorder %s52, %s53
      %p64 = scmp.eq.s32.totalorder %s18, 0
      %p65 = por %p63, %p64
      %p66 = scmp.ne.s32.totalorder %s52, %s53
      %p67 = scmp.eq.s32.totalorder %s19, 1
      %p68 = por %p66, %p67
      %p70 = scmp.ne.s32.totalorder %s53, %s69
      %p71 = scmp.eq.s32.totalorder %s19, 0
      %p72 = por %p70, %p71
      %s74 = sadd.s32 %s73, 1
      %p77 = scmp.eq.s32.totalorder %s13, 1
      %p78 = scmp.ne.s32.totalorder %s73, %s75
      %p79 = scmp.eq.s32.totalorder %s13, 0
      %p80 = por %p78, %p79
      %p81 = scmp.ne.s32.totalorder %s73, %s75
      %p82 = scmp.eq.s32.totalorder %s18, 1
      %p83 = por %p81, %p82
      %p84 = scmp.ne.s32.totalorder %s75, %s76
      %p85 = scmp.eq.s32.totalorder %s18, 0
      %p86 = por %p84, %p85
      %p87 = scmp.ne.s32.totalorder %s75, %s76
      %p88 = scmp.eq.s32.totalorder %s19, 1
      %p89 = por %p87, %p88
      %p91 = scmp.ne.s32.totalorder %s76, %s90
      %p92 = scmp.eq.s32.totalorder %s19, 0
      %p93 = por %p91, %p92
      %s95 = sadd.s32 %s94, 1
      %p98 = scmp.eq.s32.totalorder %s13, 1
      %p99 = scmp.ne.s32.totalorder %s94, %s96
      %p100 = scmp.eq.s32.totalorder %s13, 0
      %p101 = por %p99, %p100
      %p102 = scmp.ne.s32.totalorder %s94, %s96
      %p103 = scmp.eq.s32.totalorder %s18, 1
      %p104 = por %p102, %p103
      %p105 = scmp.ne.s32.totalorder %s96, %s97
      %p106 = scmp.eq.s32.totalorder %s18, 0
      %p107 = por %p105, %p106
      %p108 = scmp.ne.s32.totalorder %s96, %s97
      %p109 = scmp.eq.s32.totalorder %s19, 1
      %p110 = por %p108, %p109
      %p112 = scmp.ne.s32.totalorder %s97, %s111
      %p113 = scmp.eq.s32.totalorder %s19, 0
      %p114 = por %p112, %p113
      %s115 = ssub.s32 %s13, %s20
      %p116 = scmp.eq.s32.totalorder %s115, 0
      %s118 = sadd.s32 %s117, 1
      %s119 = scalar_select %p116, %s117, %s118
      %p122 = pneg %p116
      %p123 = scmp.eq.s32.totalorder %s13, 1
      %p124 = por %p122, %p123
      %p125 = scmp.ne.s32.totalorder %s117, %s120
      %p126 = scmp.eq.s32.totalorder %s13, 0
      %p127 = por %p125, %p126
      %p128 = scmp.ne.s32.totalorder %s117, %s120
      %p129 = scmp.eq.s32.totalorder %s18, 1
      %p130 = por %p128, %p129
      %p131 = scmp.ne.s32.totalorder %s120, %s121
      %p132 = scmp.eq.s32.totalorder %s18, 0
      %p133 = por %p131, %p132
      %p134 = scmp.ne.s32.totalorder %s120, %s121
      %p135 = scmp.eq.s32.totalorder %s19, 1
      %p136 = por %p134, %p135
      %p138 = scmp.ne.s32.totalorder %s121, %s137
      %p139 = scmp.eq.s32.totalorder %s19, 0
      %p140 = por %p138, %p139
      %p141 = scmp.le.s32.totalorder 1, %s13
      %p142 = scmp.lt.s32.totalorder %s13, 3
      %p143 = pnand %p141, %p142
      %p144 = pneg %p143
      // Predicated region
      $region9: #{tpu_custom_call.1} parent=5 // pred_check
        _
      $region10: #{tpu_custom_call.1} parent=5 // pred_check_branch
        %146 = sbr.rel (%p143) target = $region12
      $region11: #{tpu_custom_call.1} parent=5 // pred_region
        %s147 = ssub.s32 %s13, 1
        // Predicated region
        $region13: #{tpu_custom_call.1} parent=11 // pred_check
          %p148 = pneg %p86
        $region14: #{tpu_custom_call.1} parent=11 // pred_check_branch
          %150 = sbr.rel (%p148) target = $region16
        $region15: #{tpu_custom_call.1} parent=11 // pred_region
          _
        $region16: #{tpu_custom_call.1} parent=11 // pred_fallthru
          _
        // Predicated region
        $region17: #{tpu_custom_call.1} parent=11 // pred_check
          %p151 = pneg %p107
        $region18: #{tpu_custom_call.1} parent=11 // pred_check_branch
          %153 = sbr.rel (%p151) target = $region20
        $region19: #{tpu_custom_call.1} parent=11 // pred_region
          _
        $region20: #{tpu_custom_call.1} parent=11 // pred_fallthru
          _
      $region12: #{tpu_custom_call.1} parent=5 // pred_fallthru
        _
      %p154 = scmp.lt.s32.totalorder %s13, 2
      // Predicated region
      $region21: #{tpu_custom_call.1} parent=5 // pred_check
        %p155 = pneg %p154
      $region22: #{tpu_custom_call.1} parent=5 // pred_check_branch
        %157 = sbr.rel (%p155) target = $region24
      $region23: #{tpu_custom_call.1} parent=5 // pred_region
        // Predicated region
        $region25: #{tpu_custom_call.1} parent=23 // pred_check
          %p158 = pneg %p33
        $region26: #{tpu_custom_call.1} parent=23 // pred_check_branch
          %160 = sbr.rel (%p158) target = $region28
        $region27: #{tpu_custom_call.1} parent=23 // pred_region
          %p161 = scmp.lt.s32.totalorder %s13, 1
          %s162 = scalar_select %p161, %s13, 1
          %s163 = smul.addr %s162, 8
          %s164 = scalar_lea.vmem %s0, %s163
        $region28: #{tpu_custom_call.1} parent=23 // pred_fallthru
          _
        // Predicated region
        $region29: #{tpu_custom_call.1} parent=23 // pred_check
          %p165 = pneg %p59
        $region30: #{tpu_custom_call.1} parent=23 // pred_check_branch
          %167 = sbr.rel (%p165) target = $region32
        $region31: #{tpu_custom_call.1} parent=23 // pred_region
          %p168 = scmp.lt.s32.totalorder %s13, 1
          %s169 = scalar_select %p168, %s13, 1
          %s170 = smul.addr %s169, 4
          %s171 = scalar_lea.vmem %s1, %s170
        $region32: #{tpu_custom_call.1} parent=23 // pred_fallthru
          _
      $region24: #{tpu_custom_call.1} parent=5 // pred_fallthru
        _
      %p172 = scmp.le.s32.totalorder 1, %s13
      %p173 = scmp.lt.s32.totalorder %s13, 3
      %p174 = pnand %p172, %p173
      %p175 = pneg %p174
      // Predicated region
      $region33: #{tpu_custom_call.1} parent=5 // pred_check
        _
      $region34: #{tpu_custom_call.1} parent=5 // pred_check_branch
        %177 = sbr.rel (%p174) target = $region36
      $region35: #{tpu_custom_call.1} parent=5 // pred_region
        %s178 = ssub.s32 %s13, 1
        %p179 = scmp.lt.s32.totalorder %s18, 1
        %s180 = scalar_select %p179, %s18, 1
        %s181 = smul.addr %s180, 8
        %s182 = scalar_lea.vmem %s0, %s181
        %p183 = pneg %p39
        %p184 = pneg %p36
        %p185 = scmp.lt.s32.totalorder %s18, 1
        %s186 = scalar_select %p185, %s18, 1
        %s187 = smul.addr %s186, 4
        %s188 = scalar_lea.vmem %s1, %s187
        %p189 = pneg %p65
        %p190 = pneg %p62
        %p191 = pneg %p86
        %p192 = pneg %p83
        %p193 = pneg %p107
        %p194 = pneg %p104
        %p195 = pneg %p133
        %p196 = pneg %p130
        %s197 = sand.u32 %s120, 1
        %s198 = scalar_lea.sflag [#allocation3], %s197
        %s199 = sand.u32 %s120, 1
        %s200 = smul.addr %s199, 8
        %s201 = scalar_lea.vmem [#allocation2], %s200
        %p202 = scmp.lt.s32.totalorder %s18, 1
        %s203 = scalar_select %p202, %s18, 1
        %s204 = smul.addr %s203, 8
        %s205 = scalar_lea.vmem %s0, %s204
        %p206 = scmp.lt.s32.totalorder %s18, 1
        %s207 = scalar_select %p206, %s18, 1
        %s208 = smul.addr %s207, 4
        %s209 = scalar_lea.vmem %s1, %s208
        %v210 = vld [vmem:[%s205] sm:$0xff]
        %v211 = vld [vmem:[%s209] sm:$0xf]
        %v212 = vld [vmem:[%s3] sm:$0xff]
        %v213 = vld [vmem:[%s3 + $0x8] sm:$0xff]
        %v214 = vld [vmem:[%s3 + $0x10] sm:$0xff]
        %v215 = vld [vmem:[%s3 + $0x18] sm:$0xff]
        %v216 = vld [vmem:[%s3 + $0x20] sm:$0xff]
        %v217 = vld [vmem:[%s2] sm:$0x3]
        %v218 = vlaneseq
        %v219 = vshrl.u32 %v218, 7
        %v220 = vadd.s32 %v219, 8
        %v221 = vlaneseq
        %v222 = vshrl.u32 %v221, 7
        %v223 = vsub.s32 0, %v222
        %v224 = vrot.slane %v217, %v223
        %vm225 = vcmp.eq.s32.totalorder %v219, %v224
        %vm226 = vcmp.eq.s32.totalorder %v220, %v224
        %v227 = vsel %vm225, 1, 0
        %v228 = vsel %vm226, 1, 0
        %v229 = vcvt.s32.f32 %v227
        %v230 = vcvt.s32.f32 %v228
        %v231 = vlaneseq
        %v232 = vshrl.u32 %v231, 7
        %v233 = vsub.s32 1, %v232
        %v234 = vrot.slane %v217, %v233
        %vm235 = vcmp.eq.s32.totalorder %v219, %v234
        %vm236 = vcmp.eq.s32.totalorder %v220, %v234
        %238 = vset.pattern.permute.xlu0 0
        %239 = vperm.xlu0 %238, %v213
        %v240 = vpop.permute.xlu0 %239
        %v243 = vrot.slane %v212, 4
        %vm244 = vcmask 31744
        %v245 = vsel %vm244, %v243, 0
        %vm247 = vcmask 1043456
        %v249 = vsel %vm247, %v211, 0
        %251 = vmatprep.subr.mxu0 0.0
        %252 = vmatpush1.msra.mxu0 0.0
        %253 = vmatprep.subr.mxu0 0.0
        %254 = vmatpush1.msra.mxu0 0.0
        %255 = vmatprep.subr.mxu0 0.0
        %256 = vmatpush1.msra.mxu0 0.0
        %257 = vmatprep.subr.mxu0 0.0
        %258 = vmatpush1.msra.mxu0 0.0
        %259 = vmatprep.subr.mxu0 0.0
        %260 = vmatpush1.msra.mxu0 0.0
        %261 = vmatprep.subr.mxu0 0.0
        %262 = vmatpush1.msra.mxu0 0.0
        %263 = vmatprep.subr.mxu0 0.0
        %264 = vmatpush1.msra.mxu0 0.0
        %265 = vmatprep.subr.mxu0 0.0
        %266 = vmatpush1.msra.mxu0 0.0
        %267 = vmatprep.subr.mxu0 0.0
        %268 = vmatpush1.msra.mxu0 0.0
        %269 = vmatprep.subr.mxu0 0.0
        %270 = vmatpush1.msra.mxu0 0.0
        %271 = vmatprep.subr.mxu0 0.0
        %272 = vmatpush1.msra.mxu0 0.0
        %273 = vmatprep.subr.mxu0 0.0
        %274 = vmatpush1.msra.mxu0 0.0
        %275 = vmatprep.subr.mxu0 0.0
        %276 = vmatpush1.msra.mxu0 0.0
        %277 = vmatprep.subr.mxu0 0.0
        %278 = vmatpush1.msra.mxu0 0.0
        %279 = vmatprep.subr.mxu0 0.0
        %280 = vmatpush1.msra.mxu0 0.0
        %281 = vmatprep.subr.mxu0 0.0
        %282 = vmatpush1.msra.mxu0 %v249
        %283 = vmatprep.subr.mxu0 0.0
        %284 = vmatpush2.msra.mxu0 0.0
        %285 = vmatprep.subr.mxu0 0.0
        %286 = vmatpush2.msra.mxu0 0.0
        %287 = vmatprep.subr.mxu0 0.0
        %288 = vmatpush2.msra.mxu0 0.0
        %289 = vmatprep.subr.mxu0 0.0
        %290 = vmatpush2.msra.mxu0 0.0
        %291 = vmatprep.subr.mxu0 0.0
        %292 = vmatpush2.msra.mxu0 0.0
        %293 = vmatprep.subr.mxu0 0.0
        %294 = vmatpush2.msra.mxu0 0.0
        %295 = vmatprep.subr.mxu0 0.0
        %296 = vmatpush2.msra.mxu0 0.0
        %297 = vmatprep.subr.mxu0 0.0
        %298 = vmatpush2.msra.mxu0 0.0
        %299 = vmatprep.subr.mxu0 0.0
        %300 = vmatpush2.msra.mxu0 0.0
        %301 = vmatprep.subr.mxu0 0.0
        %302 = vmatpush2.msra.mxu0 0.0
        %303 = vmatprep.subr.mxu0 0.0
        %304 = vmatpush2.msra.mxu0 0.0
        %305 = vmatprep.subr.mxu0 0.0
        %306 = vmatpush2.msra.mxu0 0.0
        %307 = vmatprep.subr.mxu0 0.0
        %308 = vmatpush2.msra.mxu0 0.0
        %309 = vmatprep.subr.mxu0 0.0
        %310 = vmatpush2.msra.mxu0 0.0
        %311 = vmatprep.subr.mxu0 0.0
        %312 = vmatpush2.msra.mxu0 0.0
        %313 = vmatprep.subr.mxu0 0.0
        %314 = vmatpush2.msra.mxu0 0.0
        %315 = vmatprep.mubr.f32.mxu0 0.0
        %316 = vmatmul.mubr.f32.gmra.mxu0 %v245
        %v317 = vpop.f32.mrf.mxu0
        %v318 = vadd.f32 %v240, %v317
        %v319 = vpop.f32.mrf.mxu0
        %320 = vdwg.mxu0
        %322 = vset.pattern.permute.xlu0 0
        %323 = vperm.xlu0 %322, %v214
        %v324 = vpop.permute.xlu0 %323
        %326 = vset.pattern.permute.xlu0 0
        %327 = vperm.xlu0 %326, %v216
        %v328 = vpop.permute.xlu0 %327
        %v330 = vlaneseq
        %v331 = vand.u32 %v330, 127
        %v332 = vadd.s32 %v331, 4
        %vm333 = vcmp.eq.s32.totalorder %v219, %v332
        %v334 = vsel %vm333, 1, 0
        %v335 = vcvt.s32.f32 %v334
        %vm336 = vcmask 64512
        %v337 = vsel %vm336, %v212, 0
        %339 = vmatprep.subr.mxu0 0.0
        %340 = vmatpush1.msra.mxu0 0.0
        %341 = vmatprep.subr.mxu0 0.0
        %342 = vmatpush1.msra.mxu0 0.0
        %343 = vmatprep.subr.mxu0 0.0
        %344 = vmatpush1.msra.mxu0 0.0
        %345 = vmatprep.subr.mxu0 0.0
        %346 = vmatpush1.msra.mxu0 0.0
        %347 = vmatprep.subr.mxu0 0.0
        %348 = vmatpush1.msra.mxu0 0.0
        %349 = vmatprep.subr.mxu0 0.0
        %350 = vmatpush1.msra.mxu0 0.0
        %351 = vmatprep.subr.mxu0 0.0
        %352 = vmatpush1.msra.mxu0 0.0
        %353 = vmatprep.subr.mxu0 0.0
        %354 = vmatpush1.msra.mxu0 0.0
        %355 = vmatprep.subr.mxu0 0.0
        %356 = vmatpush1.msra.mxu0 0.0
        %357 = vmatprep.subr.mxu0 0.0
        %358 = vmatpush1.msra.mxu0 0.0
        %359 = vmatprep.subr.mxu0 0.0
        %360 = vmatpush1.msra.mxu0 0.0
        %361 = vmatprep.subr.mxu0 0.0
        %362 = vmatpush1.msra.mxu0 0.0
        %363 = vmatprep.subr.mxu0 0.0
        %364 = vmatpush1.msra.mxu0 0.0
        %365 = vmatprep.subr.mxu0 0.0
        %366 = vmatpush1.msra.mxu0 0.0
        %367 = vmatprep.subr.mxu0 0.0
        %368 = vmatpush1.msra.mxu0 0.0
        %369 = vmatprep.subr.mxu0 0.0
        %370 = vmatpush1.msra.mxu0 %v210
        %371 = vmatprep.subr.mxu0 0.0
        %372 = vmatpush2.msra.mxu0 0.0
        %373 = vmatprep.subr.mxu0 0.0
        %374 = vmatpush2.msra.mxu0 0.0
        %375 = vmatprep.subr.mxu0 0.0
        %376 = vmatpush2.msra.mxu0 0.0
        %377 = vmatprep.subr.mxu0 0.0
        %378 = vmatpush2.msra.mxu0 0.0
        %379 = vmatprep.subr.mxu0 0.0
        %380 = vmatpush2.msra.mxu0 0.0
        %381 = vmatprep.subr.mxu0 0.0
        %382 = vmatpush2.msra.mxu0 0.0
        %383 = vmatprep.subr.mxu0 0.0
        %384 = vmatpush2.msra.mxu0 0.0
        %385 = vmatprep.subr.mxu0 0.0
        %386 = vmatpush2.msra.mxu0 0.0
        %387 = vmatprep.subr.mxu0 0.0
        %388 = vmatpush2.msra.mxu0 0.0
        %389 = vmatprep.subr.mxu0 0.0
        %390 = vmatpush2.msra.mxu0 0.0
        %391 = vmatprep.subr.mxu0 0.0
        %392 = vmatpush2.msra.mxu0 0.0
        %393 = vmatprep.subr.mxu0 0.0
        %394 = vmatpush2.msra.mxu0 0.0
        %395 = vmatprep.subr.mxu0 0.0
        %396 = vmatpush2.msra.mxu0 0.0
        %397 = vmatprep.subr.mxu0 0.0
        %398 = vmatpush2.msra.mxu0 0.0
        %399 = vmatprep.subr.mxu0 0.0
        %400 = vmatpush2.msra.mxu0 0.0
        %401 = vmatprep.subr.mxu0 0.0
        %402 = vmatpush2.msra.mxu0 0.0
        %403 = vmatprep.mubr.f32.mxu0 0.0
        %404 = vmatmul.mubr.f32.gmra.mxu0 %v337
        %v405 = vpop.f32.mrf.mxu0
        %v406 = vadd.f32 0.0, %v405
        %v407 = vpop.f32.mrf.mxu0
        %408 = vdwg.mxu0
        %vm409 = vcmask 130048
        %v411 = vsel %vm409, %v406, 0
        %413 = vmatprep.subr.mxu0 0.0
        %414 = vmatpush1.msra.mxu0 0.0
        %415 = vmatprep.subr.mxu0 0.0
        %416 = vmatpush1.msra.mxu0 0.0
        %417 = vmatprep.subr.mxu0 0.0
        %418 = vmatpush1.msra.mxu0 0.0
        %419 = vmatprep.subr.mxu0 0.0
        %420 = vmatpush1.msra.mxu0 0.0
        %421 = vmatprep.subr.mxu0 0.0
        %422 = vmatpush1.msra.mxu0 0.0
        %423 = vmatprep.subr.mxu0 0.0
        %424 = vmatpush1.msra.mxu0 0.0
        %425 = vmatprep.subr.mxu0 0.0
        %426 = vmatpush1.msra.mxu0 0.0
        %427 = vmatprep.subr.mxu0 0.0
        %428 = vmatpush1.msra.mxu0 0.0
        %429 = vmatprep.subr.mxu0 0.0
        %430 = vmatpush1.msra.mxu0 0.0
        %431 = vmatprep.subr.mxu0 0.0
        %432 = vmatpush1.msra.mxu0 0.0
        %433 = vmatprep.subr.mxu0 0.0
        %434 = vmatpush1.msra.mxu0 0.0
        %435 = vmatprep.subr.mxu0 0.0
        %436 = vmatpush1.msra.mxu0 0.0
        %437 = vmatprep.subr.mxu0 0.0
        %438 = vmatpush1.msra.mxu0 0.0
        %439 = vmatprep.subr.mxu0 0.0
        %440 = vmatpush1.msra.mxu0 0.0
        %441 = vmatprep.subr.mxu0 0.0
        %442 = vmatpush1.msra.mxu0 %v230
        %443 = vmatprep.subr.mxu0 0.0
        %444 = vmatpush1.msra.mxu0 %v229
        %445 = vmatprep.subr.mxu0 0.0
        %446 = vmatpush2.msra.mxu0 0.0
        %447 = vmatprep.subr.mxu0 0.0
        %448 = vmatpush2.msra.mxu0 0.0
        %449 = vmatprep.subr.mxu0 0.0
        %450 = vmatpush2.msra.mxu0 0.0
        %451 = vmatprep.subr.mxu0 0.0
        %452 = vmatpush2.msra.mxu0 0.0
        %453 = vmatprep.subr.mxu0 0.0
        %454 = vmatpush2.msra.mxu0 0.0
        %455 = vmatprep.subr.mxu0 0.0
        %456 = vmatpush2.msra.mxu0 0.0
        %457 = vmatprep.subr.mxu0 0.0
        %458 = vmatpush2.msra.mxu0 0.0
        %459 = vmatprep.subr.mxu0 0.0
        %460 = vmatpush2.msra.mxu0 0.0
        %461 = vmatprep.subr.mxu0 0.0
        %462 = vmatpush2.msra.mxu0 0.0
        %463 = vmatprep.subr.mxu0 0.0
        %464 = vmatpush2.msra.mxu0 0.0
        %465 = vmatprep.subr.mxu0 0.0
        %466 = vmatpush2.msra.mxu0 0.0
        %467 = vmatprep.subr.mxu0 0.0
        %468 = vmatpush2.msra.mxu0 0.0
        %469 = vmatprep.subr.mxu0 0.0
        %470 = vmatpush2.msra.mxu0 0.0
        %471 = vmatprep.subr.mxu0 0.0
        %472 = vmatpush2.msra.mxu0 0.0
        %473 = vmatprep.subr.mxu0 0.0
        %474 = vmatpush2.msra.mxu0 0.0
        %475 = vmatprep.subr.mxu0 0.0
        %476 = vmatpush2.msra.mxu0 0.0
        %477 = vmatprep.mubr.f32.mxu0 0.0
        %478 = vmatmul.mubr.f32.gmra.mxu0 %v411
        %v479 = vpop.f32.mrf.mxu0
        %v480 = vadd.f32 %v318, %v479
        %v481 = vpop.f32.mrf.mxu0
        %482 = vdwg.mxu0
        %v483 = vmax.f32 %v480, 0.0
        %v486 = vunpack.c.l.s4 1966171168
        %v487 = vunpack.c.0.s8 %v486
        %v488 = vlaneseq
        %v489 = vshrl.u32 %v488, 7
        %v490 = vsub.s32 %v487, %v489
        %v491 = vrot.slane %v483, %v490
        %v492 = vcombine.high %v491, %v491
        %v494 = vunpack.c.l.s4 1966171168
        %v495 = vunpack.c.0.s8 %v494
        %v496 = vlaneseq
        %v497 = vshrl.u32 %v496, 7
        %v498 = vsub.s32 %v495, %v497
        %v499 = vrot.slane %v491, %v498
        %v501 = vunpack.c.l.s4 1966171168
        %v502 = vunpack.c.0.s8 %v501
        %v503 = vlaneseq
        %v504 = vshrl.u32 %v503, 7
        %v505 = vsub.s32 %v502, %v504
        %v506 = vrot.slane %v492, %v505
        %v507 = vcombine.high %v499, %v499
        %v508 = vcombine.high %v506, %v506
        %v509 = vsel %vm235, 1, 0
        %v510 = vsel %vm236, 1, 0
        %vm511 = vcmp.eq.s32.totalorder %v509, 1
        %vm512 = vcmp.eq.s32.totalorder %v510, 1
        %v513 = vlaneseq
        %v514 = vshrl.u32 %v513, 7
        %v515 = vsub.s32 0, %v514
        %v516 = vrot.slane %v499, %v515
        %v517 = vlaneseq
        %v518 = vshrl.u32 %v517, 7
        %v519 = vsub.s32 0, %v518
        %v520 = vrot.slane %v506, %v519
        %v521 = vlaneseq
        %v522 = vshrl.u32 %v521, 7
        %v523 = vsub.s32 0, %v522
        %v524 = vrot.slane %v507, %v523
        %v525 = vlaneseq
        %v526 = vshrl.u32 %v525, 7
        %v527 = vsub.s32 0, %v526
        %v528 = vrot.slane %v508, %v527
        %v533 = vsel %vm511, %v516, 0.0
        %v534 = vsel %vm512, %v516, 0.0
        %v535 = vsel %vm511, %v520, 0.0
        %v536 = vsel %vm512, %v520, 0.0
        %v537 = vsel %vm511, %v524, 0.0
        %v538 = vsel %vm512, %v524, 0.0
        %v539 = vsel %vm511, %v528, 0.0
        %v540 = vsel %vm512, %v528, 0.0
        %vm541 = vcmask 261120
        %v542 = vsel %vm541, %v533, -inf
        %543 = vmax.xlane.f32.xlu0 %v542
        %v544 = vpop.xlane.xlu0 %543
        %v545 = vsel %vm541, %v534, -inf
        %546 = vmax.xlane.f32.xlu0 %v545
        %v547 = vpop.xlane.xlu0 %546
        %v548 = vsel %vm541, %v535, -inf
        %549 = vmax.xlane.f32.xlu0 %v548
        %v550 = vpop.xlane.xlu0 %549
        %v551 = vsel %vm541, %v536, -inf
        %552 = vmax.xlane.f32.xlu0 %v551
        %v553 = vpop.xlane.xlu0 %552
        %v554 = vsel %vm541, %v537, -inf
        %555 = vmax.xlane.f32.xlu0 %v554
        %v556 = vpop.xlane.xlu0 %555
        %v557 = vsel %vm541, %v538, -inf
        %558 = vmax.xlane.f32.xlu0 %v557
        %v559 = vpop.xlane.xlu0 %558
        %v560 = vsel %vm541, %v539, -inf
        %561 = vmax.xlane.f32.xlu0 %v560
        %v562 = vpop.xlane.xlu0 %561
        %v563 = vsel %vm541, %v540, -inf
        %564 = vmax.xlane.f32.xlu0 %v563
        %v565 = vpop.xlane.xlu0 %564
        %v574 = vlaneseq
        %v575 = vshrl.u32 %v574, 7
        %v576 = vsub.s32 %v331, %v575
        %v577 = vrot.slane %v544, %v576
        %v578 = vadd.s32 %v331, 4294967288
        %v579 = vlaneseq
        %v580 = vshrl.u32 %v579, 7
        %v581 = vsub.s32 %v578, %v580
        %v582 = vrot.slane %v547, %v581
        %vm583 = vcmask 130112
        %v584 = vsel %vm583, %v582, %v577
        %v585 = vlaneseq
        %v586 = vshrl.u32 %v585, 7
        %v587 = vsub.s32 %v331, %v586
        %v588 = vrot.slane %v550, %v587
        %v589 = vlaneseq
        %v590 = vshrl.u32 %v589, 7
        %v591 = vsub.s32 %v578, %v590
        %v592 = vrot.slane %v553, %v591
        %v593 = vsel %vm583, %v592, %v588
        %v594 = vlaneseq
        %v595 = vshrl.u32 %v594, 7
        %v596 = vsub.s32 %v331, %v595
        %v597 = vrot.slane %v556, %v596
        %v598 = vlaneseq
        %v599 = vshrl.u32 %v598, 7
        %v600 = vsub.s32 %v578, %v599
        %v601 = vrot.slane %v559, %v600
        %v602 = vsel %vm583, %v601, %v597
        %v603 = vlaneseq
        %v604 = vshrl.u32 %v603, 7
        %v605 = vsub.s32 %v331, %v604
        %v606 = vrot.slane %v562, %v605
        %v607 = vlaneseq
        %v608 = vshrl.u32 %v607, 7
        %v609 = vsub.s32 %v578, %v608
        %v610 = vrot.slane %v565, %v609
        %v611 = vsel %vm583, %v610, %v606
        %vm612 = vcmask 1041409
        %v613 = vsel %vm612, %v593, %v584
        %vm614 = vcmask 1042434
        %v615 = vsel %vm614, %v602, %v613
        %vm616 = vcmask 1043459
        %v617 = vsel %vm616, %v611, %v615
        %v618 = vsel %vm244, %v214, 0
        %v620 = vsel %vm247, %v617, 0
        %622 = vmatprep.subr.mxu0 0.0
        %623 = vmatpush1.msra.mxu0 0.0
        %624 = vmatprep.subr.mxu0 0.0
        %625 = vmatpush1.msra.mxu0 0.0
        %626 = vmatprep.subr.mxu0 0.0
        %627 = vmatpush1.msra.mxu0 0.0
        %628 = vmatprep.subr.mxu0 0.0
        %629 = vmatpush1.msra.mxu0 0.0
        %630 = vmatprep.subr.mxu0 0.0
        %631 = vmatpush1.msra.mxu0 0.0
        %632 = vmatprep.subr.mxu0 0.0
        %633 = vmatpush1.msra.mxu0 0.0
        %634 = vmatprep.subr.mxu0 0.0
        %635 = vmatpush1.msra.mxu0 0.0
        %636 = vmatprep.subr.mxu0 0.0
        %637 = vmatpush1.msra.mxu0 0.0
        %638 = vmatprep.subr.mxu0 0.0
        %639 = vmatpush1.msra.mxu0 0.0
        %640 = vmatprep.subr.mxu0 0.0
        %641 = vmatpush1.msra.mxu0 0.0
        %642 = vmatprep.subr.mxu0 0.0
        %643 = vmatpush1.msra.mxu0 0.0
        %644 = vmatprep.subr.mxu0 0.0
        %645 = vmatpush1.msra.mxu0 0.0
        %646 = vmatprep.subr.mxu0 0.0
        %647 = vmatpush1.msra.mxu0 0.0
        %648 = vmatprep.subr.mxu0 0.0
        %649 = vmatpush1.msra.mxu0 0.0
        %650 = vmatprep.subr.mxu0 0.0
        %651 = vmatpush1.msra.mxu0 0.0
        %652 = vmatprep.subr.mxu0 0.0
        %653 = vmatpush1.msra.mxu0 %v620
        %654 = vmatprep.subr.mxu0 0.0
        %655 = vmatpush2.msra.mxu0 0.0
        %656 = vmatprep.subr.mxu0 0.0
        %657 = vmatpush2.msra.mxu0 0.0
        %658 = vmatprep.subr.mxu0 0.0
        %659 = vmatpush2.msra.mxu0 0.0
        %660 = vmatprep.subr.mxu0 0.0
        %661 = vmatpush2.msra.mxu0 0.0
        %662 = vmatprep.subr.mxu0 0.0
        %663 = vmatpush2.msra.mxu0 0.0
        %664 = vmatprep.subr.mxu0 0.0
        %665 = vmatpush2.msra.mxu0 0.0
        %666 = vmatprep.subr.mxu0 0.0
        %667 = vmatpush2.msra.mxu0 0.0
        %668 = vmatprep.subr.mxu0 0.0
        %669 = vmatpush2.msra.mxu0 0.0
        %670 = vmatprep.subr.mxu0 0.0
        %671 = vmatpush2.msra.mxu0 0.0
        %672 = vmatprep.subr.mxu0 0.0
        %673 = vmatpush2.msra.mxu0 0.0
        %674 = vmatprep.subr.mxu0 0.0
        %675 = vmatpush2.msra.mxu0 0.0
        %676 = vmatprep.subr.mxu0 0.0
        %677 = vmatpush2.msra.mxu0 0.0
        %678 = vmatprep.subr.mxu0 0.0
        %679 = vmatpush2.msra.mxu0 0.0
        %680 = vmatprep.subr.mxu0 0.0
        %681 = vmatpush2.msra.mxu0 0.0
        %682 = vmatprep.subr.mxu0 0.0
        %683 = vmatpush2.msra.mxu0 0.0
        %684 = vmatprep.subr.mxu0 0.0
        %685 = vmatpush2.msra.mxu0 0.0
        %686 = vmatprep.mubr.f32.mxu0 0.0
        %687 = vmatmul.mubr.f32.gmra.mxu0 %v618
        %v688 = vpop.f32.mrf.mxu0
        %v689 = vadd.f32 0.0, %v688
        %v690 = vpop.f32.mrf.mxu0
        %691 = vdwg.mxu0
        %v692 = vrot.slane %v213, 4
        %v693 = vsel %vm336, %v692, 0
        %695 = vmatprep.subr.mxu0 0.0
        %696 = vmatpush1.msra.mxu0 0.0
        %697 = vmatprep.subr.mxu0 0.0
        %698 = vmatpush1.msra.mxu0 0.0
        %699 = vmatprep.subr.mxu0 0.0
        %700 = vmatpush1.msra.mxu0 0.0
        %701 = vmatprep.subr.mxu0 0.0
        %702 = vmatpush1.msra.mxu0 0.0
        %703 = vmatprep.subr.mxu0 0.0
        %704 = vmatpush1.msra.mxu0 0.0
        %705 = vmatprep.subr.mxu0 0.0
        %706 = vmatpush1.msra.mxu0 0.0
        %707 = vmatprep.subr.mxu0 0.0
        %708 = vmatpush1.msra.mxu0 0.0
        %709 = vmatprep.subr.mxu0 0.0
        %710 = vmatpush1.msra.mxu0 0.0
        %711 = vmatprep.subr.mxu0 0.0
        %712 = vmatpush1.msra.mxu0 0.0
        %713 = vmatprep.subr.mxu0 0.0
        %714 = vmatpush1.msra.mxu0 0.0
        %715 = vmatprep.subr.mxu0 0.0
        %716 = vmatpush1.msra.mxu0 0.0
        %717 = vmatprep.subr.mxu0 0.0
        %718 = vmatpush1.msra.mxu0 0.0
        %719 = vmatprep.subr.mxu0 0.0
        %720 = vmatpush1.msra.mxu0 0.0
        %721 = vmatprep.subr.mxu0 0.0
        %722 = vmatpush1.msra.mxu0 0.0
        %723 = vmatprep.subr.mxu0 0.0
        %724 = vmatpush1.msra.mxu0 0.0
        %725 = vmatprep.subr.mxu0 0.0
        %726 = vmatpush1.msra.mxu0 %v210
        %727 = vmatprep.subr.mxu0 0.0
        %728 = vmatpush2.msra.mxu0 0.0
        %729 = vmatprep.subr.mxu0 0.0
        %730 = vmatpush2.msra.mxu0 0.0
        %731 = vmatprep.subr.mxu0 0.0
        %732 = vmatpush2.msra.mxu0 0.0
        %733 = vmatprep.subr.mxu0 0.0
        %734 = vmatpush2.msra.mxu0 0.0
        %735 = vmatprep.subr.mxu0 0.0
        %736 = vmatpush2.msra.mxu0 0.0
        %737 = vmatprep.subr.mxu0 0.0
        %738 = vmatpush2.msra.mxu0 0.0
        %739 = vmatprep.subr.mxu0 0.0
        %740 = vmatpush2.msra.mxu0 0.0
        %741 = vmatprep.subr.mxu0 0.0
        %742 = vmatpush2.msra.mxu0 0.0
        %743 = vmatprep.subr.mxu0 0.0
        %744 = vmatpush2.msra.mxu0 0.0
        %745 = vmatprep.subr.mxu0 0.0
        %746 = vmatpush2.msra.mxu0 0.0
        %747 = vmatprep.subr.mxu0 0.0
        %748 = vmatpush2.msra.mxu0 0.0
        %749 = vmatprep.subr.mxu0 0.0
        %750 = vmatpush2.msra.mxu0 0.0
        %751 = vmatprep.subr.mxu0 0.0
        %752 = vmatpush2.msra.mxu0 0.0
        %753 = vmatprep.subr.mxu0 0.0
        %754 = vmatpush2.msra.mxu0 0.0
        %755 = vmatprep.subr.mxu0 0.0
        %756 = vmatpush2.msra.mxu0 0.0
        %757 = vmatprep.subr.mxu0 0.0
        %758 = vmatpush2.msra.mxu0 0.0
        %759 = vmatprep.mubr.f32.mxu0 0.0
        %760 = vmatmul.mubr.f32.gmra.mxu0 %v693
        %v761 = vpop.f32.mrf.mxu0
        %v762 = vadd.f32 %v689, %v761
        %v763 = vpop.f32.mrf.mxu0
        %764 = vdwg.mxu0
        %v765 = vrot.slane %v324, 4
        %v767 = vadd.f32 %v762, %v765
        %v768 = vmax.f32 %v767, 0.0
        %v770 = vsel %vm244, %v215, 0
        %v773 = vsel %vm247, %v768, 0
        %775 = vmatprep.subr.mxu0 0.0
        %776 = vmatpush1.msra.mxu0 0.0
        %777 = vmatprep.subr.mxu0 0.0
        %778 = vmatpush1.msra.mxu0 0.0
        %779 = vmatprep.subr.mxu0 0.0
        %780 = vmatpush1.msra.mxu0 0.0
        %781 = vmatprep.subr.mxu0 0.0
        %782 = vmatpush1.msra.mxu0 0.0
        %783 = vmatprep.subr.mxu0 0.0
        %784 = vmatpush1.msra.mxu0 0.0
        %785 = vmatprep.subr.mxu0 0.0
        %786 = vmatpush1.msra.mxu0 0.0
        %787 = vmatprep.subr.mxu0 0.0
        %788 = vmatpush1.msra.mxu0 0.0
        %789 = vmatprep.subr.mxu0 0.0
        %790 = vmatpush1.msra.mxu0 0.0
        %791 = vmatprep.subr.mxu0 0.0
        %792 = vmatpush1.msra.mxu0 0.0
        %793 = vmatprep.subr.mxu0 0.0
        %794 = vmatpush1.msra.mxu0 0.0
        %795 = vmatprep.subr.mxu0 0.0
        %796 = vmatpush1.msra.mxu0 0.0
        %797 = vmatprep.subr.mxu0 0.0
        %798 = vmatpush1.msra.mxu0 0.0
        %799 = vmatprep.subr.mxu0 0.0
        %800 = vmatpush1.msra.mxu0 0.0
        %801 = vmatprep.subr.mxu0 0.0
        %802 = vmatpush1.msra.mxu0 0.0
        %803 = vmatprep.subr.mxu0 0.0
        %804 = vmatpush1.msra.mxu0 0.0
        %805 = vmatprep.subr.mxu0 0.0
        %806 = vmatpush1.msra.mxu0 %v773
        %807 = vmatprep.subr.mxu0 0.0
        %808 = vmatpush2.msra.mxu0 0.0
        %809 = vmatprep.subr.mxu0 0.0
        %810 = vmatpush2.msra.mxu0 0.0
        %811 = vmatprep.subr.mxu0 0.0
        %812 = vmatpush2.msra.mxu0 0.0
        %813 = vmatprep.subr.mxu0 0.0
        %814 = vmatpush2.msra.mxu0 0.0
        %815 = vmatprep.subr.mxu0 0.0
        %816 = vmatpush2.msra.mxu0 0.0
        %817 = vmatprep.subr.mxu0 0.0
        %818 = vmatpush2.msra.mxu0 0.0
        %819 = vmatprep.subr.mxu0 0.0
        %820 = vmatpush2.msra.mxu0 0.0
        %821 = vmatprep.subr.mxu0 0.0
        %822 = vmatpush2.msra.mxu0 0.0
        %823 = vmatprep.subr.mxu0 0.0
        %824 = vmatpush2.msra.mxu0 0.0
        %825 = vmatprep.subr.mxu0 0.0
        %826 = vmatpush2.msra.mxu0 0.0
        %827 = vmatprep.subr.mxu0 0.0
        %828 = vmatpush2.msra.mxu0 0.0
        %829 = vmatprep.subr.mxu0 0.0
        %830 = vmatpush2.msra.mxu0 0.0
        %831 = vmatprep.subr.mxu0 0.0
        %832 = vmatpush2.msra.mxu0 0.0
        %833 = vmatprep.subr.mxu0 0.0
        %834 = vmatpush2.msra.mxu0 0.0
        %835 = vmatprep.subr.mxu0 0.0
        %836 = vmatpush2.msra.mxu0 0.0
        %837 = vmatprep.subr.mxu0 0.0
        %838 = vmatpush2.msra.mxu0 0.0
        %839 = vmatprep.mubr.f32.mxu0 0.0
        %840 = vmatmul.mubr.f32.gmra.mxu0 %v770
        %v841 = vpop.f32.mrf.mxu0
        %v842 = vadd.f32 %v328, %v841
        %v843 = vpop.f32.mrf.mxu0
        %844 = vdwg.mxu0
        %v845 = vmul.f32 %v842, %v842
        %v846 = vsel %vm409, %v845, 0.0
        %v847 = vrot.slane %v846, 4
        %v848 = vadd.f32 %v846, %v847
        %v849 = vrot.slane %v848, 2
        %v850 = vadd.f32 %v848, %v849
        %v851 = vrot.slane %v850, 1
        %v852 = vadd.f32 %v850, %v851
        %v853 = vrsqrt.pop %v852
        %v854 = vmin.f32 %v853, 1.0
        %v855 = vmul.f32 %v842, %v854
        %v857 = vsel %vm336, %v335, 0
        %859 = vmatprep.subr.mxu0 0.0
        %860 = vmatpush1.msra.mxu0 0.0
        %861 = vmatprep.subr.mxu0 0.0
        %862 = vmatpush1.msra.mxu0 0.0
        %863 = vmatprep.subr.mxu0 0.0
        %864 = vmatpush1.msra.mxu0 0.0
        %865 = vmatprep.subr.mxu0 0.0
        %866 = vmatpush1.msra.mxu0 0.0
        %867 = vmatprep.subr.mxu0 0.0
        %868 = vmatpush1.msra.mxu0 0.0
        %869 = vmatprep.subr.mxu0 0.0
        %870 = vmatpush1.msra.mxu0 0.0
        %871 = vmatprep.subr.mxu0 0.0
        %872 = vmatpush1.msra.mxu0 0.0
        %873 = vmatprep.subr.mxu0 0.0
        %874 = vmatpush1.msra.mxu0 0.0
        %875 = vmatprep.subr.mxu0 0.0
        %876 = vmatpush1.msra.mxu0 0.0
        %877 = vmatprep.subr.mxu0 0.0
        %878 = vmatpush1.msra.mxu0 0.0
        %879 = vmatprep.subr.mxu0 0.0
        %880 = vmatpush1.msra.mxu0 0.0
        %881 = vmatprep.subr.mxu0 0.0
        %882 = vmatpush1.msra.mxu0 0.0
        %883 = vmatprep.subr.mxu0 0.0
        %884 = vmatpush1.msra.mxu0 0.0
        %885 = vmatprep.subr.mxu0 0.0
        %886 = vmatpush1.msra.mxu0 0.0
        %887 = vmatprep.subr.mxu0 0.0
        %888 = vmatpush1.msra.mxu0 0.0
        %889 = vmatprep.subr.mxu0 0.0
        %890 = vmatpush1.msra.mxu0 %v210
        %891 = vmatprep.subr.mxu0 0.0
        %892 = vmatpush2.msra.mxu0 0.0
        %893 = vmatprep.subr.mxu0 0.0
        %894 = vmatpush2.msra.mxu0 0.0
        %895 = vmatprep.subr.mxu0 0.0
        %896 = vmatpush2.msra.mxu0 0.0
        %897 = vmatprep.subr.mxu0 0.0
        %898 = vmatpush2.msra.mxu0 0.0
        %899 = vmatprep.subr.mxu0 0.0
        %900 = vmatpush2.msra.mxu0 0.0
        %901 = vmatprep.subr.mxu0 0.0
        %902 = vmatpush2.msra.mxu0 0.0
        %903 = vmatprep.subr.mxu0 0.0
        %904 = vmatpush2.msra.mxu0 0.0
        %905 = vmatprep.subr.mxu0 0.0
        %906 = vmatpush2.msra.mxu0 0.0
        %907 = vmatprep.subr.mxu0 0.0
        %908 = vmatpush2.msra.mxu0 0.0
        %909 = vmatprep.subr.mxu0 0.0
        %910 = vmatpush2.msra.mxu0 0.0
        %911 = vmatprep.subr.mxu0 0.0
        %912 = vmatpush2.msra.mxu0 0.0
        %913 = vmatprep.subr.mxu0 0.0
        %914 = vmatpush2.msra.mxu0 0.0
        %915 = vmatprep.subr.mxu0 0.0
        %916 = vmatpush2.msra.mxu0 0.0
        %917 = vmatprep.subr.mxu0 0.0
        %918 = vmatpush2.msra.mxu0 0.0
        %919 = vmatprep.subr.mxu0 0.0
        %920 = vmatpush2.msra.mxu0 0.0
        %921 = vmatprep.subr.mxu0 0.0
        %922 = vmatpush2.msra.mxu0 0.0
        %923 = vmatprep.mubr.f32.mxu0 0.0
        %924 = vmatmul.mubr.f32.gmra.mxu0 %v857
        %v925 = vpop.f32.mrf.mxu0
        %v926 = vadd.f32 0.0, %v925
        %v927 = vpop.f32.mrf.mxu0
        %928 = vdwg.mxu0
        %v929 = vadd.f32 %v855, %v926
        %930 = vmatprep.subr.mxu0 0.0
        %931 = vmatpush1.msra.mxu0 0.0
        %932 = vmatprep.subr.mxu0 0.0
        %933 = vmatpush1.msra.mxu0 0.0
        %934 = vmatprep.subr.mxu0 0.0
        %935 = vmatpush1.msra.mxu0 0.0
        %936 = vmatprep.subr.mxu0 0.0
        %937 = vmatpush1.msra.mxu0 0.0
        %938 = vmatprep.subr.mxu0 0.0
        %939 = vmatpush1.msra.mxu0 0.0
        %940 = vmatprep.subr.mxu0 0.0
        %941 = vmatpush1.msra.mxu0 0.0
        %942 = vmatprep.subr.mxu0 0.0
        %943 = vmatpush1.msra.mxu0 0.0
        %944 = vmatprep.subr.mxu0 0.0
        %945 = vmatpush1.msra.mxu0 0.0
        %946 = vmatprep.subr.mxu0 0.0
        %947 = vmatpush1.msra.mxu0 0.0
        %948 = vmatprep.subr.mxu0 0.0
        %949 = vmatpush1.msra.mxu0 0.0
        %950 = vmatprep.subr.mxu0 0.0
        %951 = vmatpush1.msra.mxu0 0.0
        %952 = vmatprep.subr.mxu0 0.0
        %953 = vmatpush1.msra.mxu0 0.0
        %954 = vmatprep.subr.mxu0 0.0
        %955 = vmatpush1.msra.mxu0 0.0
        %956 = vmatprep.subr.mxu0 0.0
        %957 = vmatpush1.msra.mxu0 0.0
        %958 = vmatprep.subr.mxu0 0.0
        %959 = vmatpush1.msra.mxu0 0.0
        %960 = vmatprep.subr.mxu0 0.0
        %961 = vmatpush1.msra.mxu0 %v929
        %962 = vmatprep.subr.mxu0 0.0
        %963 = vmatpush2.msra.mxu0 0.0
        %964 = vmatprep.subr.mxu0 0.0
        %965 = vmatpush2.msra.mxu0 0.0
        %966 = vmatprep.subr.mxu0 0.0
        %967 = vmatpush2.msra.mxu0 0.0
        %968 = vmatprep.subr.mxu0 0.0
        %969 = vmatpush2.msra.mxu0 0.0
        %970 = vmatprep.subr.mxu0 0.0
        %971 = vmatpush2.msra.mxu0 0.0
        %972 = vmatprep.subr.mxu0 0.0
        %973 = vmatpush2.msra.mxu0 0.0
        %974 = vmatprep.subr.mxu0 0.0
        %975 = vmatpush2.msra.mxu0 0.0
        %976 = vmatprep.subr.mxu0 0.0
        %977 = vmatpush2.msra.mxu0 0.0
        %978 = vmatprep.subr.mxu0 0.0
        %979 = vmatpush2.msra.mxu0 0.0
        %980 = vmatprep.subr.mxu0 0.0
        %981 = vmatpush2.msra.mxu0 0.0
        %982 = vmatprep.subr.mxu0 0.0
        %983 = vmatpush2.msra.mxu0 0.0
        %984 = vmatprep.subr.mxu0 0.0
        %985 = vmatpush2.msra.mxu0 0.0
        %986 = vmatprep.subr.mxu0 0.0
        %987 = vmatpush2.msra.mxu0 0.0
        %988 = vmatprep.subr.mxu0 0.0
        %989 = vmatpush2.msra.mxu0 0.0
        %990 = vmatprep.subr.mxu0 0.0
        %991 = vmatpush2.msra.mxu0 0.0
        %992 = vmatprep.subr.mxu0 0.0
        %993 = vmatpush2.msra.mxu0 0.0
        %994 = vmatprep.mubr.f32.mxu0 0.0
        %995 = vmatmul.mubr.f32.gmra.mxu0 %v337
        %v996 = vpop.f32.mrf.mxu0
        %v997 = vadd.f32 0.0, %v996
        %v998 = vpop.f32.mrf.mxu0
        %999 = vdwg.mxu0
        %v1001 = vsel %vm409, %v997, 0
        %1003 = vmatprep.subr.mxu0 0.0
        %1004 = vmatpush1.msra.mxu0 0.0
        %1005 = vmatprep.subr.mxu0 0.0
        %1006 = vmatpush1.msra.mxu0 0.0
        %1007 = vmatprep.subr.mxu0 0.0
        %1008 = vmatpush1.msra.mxu0 0.0
        %1009 = vmatprep.subr.mxu0 0.0
        %1010 = vmatpush1.msra.mxu0 0.0
        %1011 = vmatprep.subr.mxu0 0.0
        %1012 = vmatpush1.msra.mxu0 0.0
        %1013 = vmatprep.subr.mxu0 0.0
        %1014 = vmatpush1.msra.mxu0 0.0
        %1015 = vmatprep.subr.mxu0 0.0
        %1016 = vmatpush1.msra.mxu0 0.0
        %1017 = vmatprep.subr.mxu0 0.0
        %1018 = vmatpush1.msra.mxu0 0.0
        %1019 = vmatprep.subr.mxu0 0.0
        %1020 = vmatpush1.msra.mxu0 0.0
        %1021 = vmatprep.subr.mxu0 0.0
        %1022 = vmatpush1.msra.mxu0 0.0
        %1023 = vmatprep.subr.mxu0 0.0
        %1024 = vmatpush1.msra.mxu0 0.0
        %1025 = vmatprep.subr.mxu0 0.0
        %1026 = vmatpush1.msra.mxu0 0.0
        %1027 = vmatprep.subr.mxu0 0.0
        %1028 = vmatpush1.msra.mxu0 0.0
        %1029 = vmatprep.subr.mxu0 0.0
        %1030 = vmatpush1.msra.mxu0 0.0
        %1031 = vmatprep.subr.mxu0 0.0
        %1032 = vmatpush1.msra.mxu0 %v230
        %1033 = vmatprep.subr.mxu0 0.0
        %1034 = vmatpush1.msra.mxu0 %v229
        %1035 = vmatprep.subr.mxu0 0.0
        %1036 = vmatpush2.msra.mxu0 0.0
        %1037 = vmatprep.subr.mxu0 0.0
        %1038 = vmatpush2.msra.mxu0 0.0
        %1039 = vmatprep.subr.mxu0 0.0
        %1040 = vmatpush2.msra.mxu0 0.0
        %1041 = vmatprep.subr.mxu0 0.0
        %1042 = vmatpush2.msra.mxu0 0.0
        %1043 = vmatprep.subr.mxu0 0.0
        %1044 = vmatpush2.msra.mxu0 0.0
        %1045 = vmatprep.subr.mxu0 0.0
        %1046 = vmatpush2.msra.mxu0 0.0
        %1047 = vmatprep.subr.mxu0 0.0
        %1048 = vmatpush2.msra.mxu0 0.0
        %1049 = vmatprep.subr.mxu0 0.0
        %1050 = vmatpush2.msra.mxu0 0.0
        %1051 = vmatprep.subr.mxu0 0.0
        %1052 = vmatpush2.msra.mxu0 0.0
        %1053 = vmatprep.subr.mxu0 0.0
        %1054 = vmatpush2.msra.mxu0 0.0
        %1055 = vmatprep.subr.mxu0 0.0
        %1056 = vmatpush2.msra.mxu0 0.0
        %1057 = vmatprep.subr.mxu0 0.0
        %1058 = vmatpush2.msra.mxu0 0.0
        %1059 = vmatprep.subr.mxu0 0.0
        %1060 = vmatpush2.msra.mxu0 0.0
        %1061 = vmatprep.subr.mxu0 0.0
        %1062 = vmatpush2.msra.mxu0 0.0
        %1063 = vmatprep.subr.mxu0 0.0
        %1064 = vmatpush2.msra.mxu0 0.0
        %1065 = vmatprep.subr.mxu0 0.0
        %1066 = vmatpush2.msra.mxu0 0.0
        %1067 = vmatprep.mubr.f32.mxu0 0.0
        %1068 = vmatmul.mubr.f32.gmra.mxu0 %v1001
        %v1069 = vpop.f32.mrf.mxu0
        %v1070 = vadd.f32 %v318, %v1069
        %v1071 = vpop.f32.mrf.mxu0
        %1072 = vdwg.mxu0
        %v1073 = vmax.f32 %v1070, 0.0
        %v1076 = vunpack.c.l.s4 1966171168
        %v1077 = vunpack.c.0.s8 %v1076
        %v1078 = vlaneseq
        %v1079 = vshrl.u32 %v1078, 7
        %v1080 = vsub.s32 %v1077, %v1079
        %v1081 = vrot.slane %v1073, %v1080
        %v1082 = vcombine.high %v1081, %v1081
        %v1084 = vunpack.c.l.s4 1966171168
        %v1085 = vunpack.c.0.s8 %v1084
        %v1086 = vlaneseq
        %v1087 = vshrl.u32 %v1086, 7
        %v1088 = vsub.s32 %v1085, %v1087
        %v1089 = vrot.slane %v1081, %v1088
        %v1091 = vunpack.c.l.s4 1966171168
        %v1092 = vunpack.c.0.s8 %v1091
        %v1093 = vlaneseq
        %v1094 = vshrl.u32 %v1093, 7
        %v1095 = vsub.s32 %v1092, %v1094
        %v1096 = vrot.slane %v1082, %v1095
        %v1097 = vcombine.high %v1089, %v1089
        %v1098 = vcombine.high %v1096, %v1096
        %v1099 = vlaneseq
        %v1100 = vshrl.u32 %v1099, 7
        %v1101 = vsub.s32 0, %v1100
        %v1102 = vrot.slane %v1089, %v1101
        %v1103 = vlaneseq
        %v1104 = vshrl.u32 %v1103, 7
        %v1105 = vsub.s32 0, %v1104
        %v1106 = vrot.slane %v1096, %v1105
        %v1107 = vlaneseq
        %v1108 = vshrl.u32 %v1107, 7
        %v1109 = vsub.s32 0, %v1108
        %v1110 = vrot.slane %v1097, %v1109
        %v1111 = vlaneseq
        %v1112 = vshrl.u32 %v1111, 7
        %v1113 = vsub.s32 0, %v1112
        %v1114 = vrot.slane %v1098, %v1113
        %v1119 = vsel %vm511, %v1102, 0.0
        %v1120 = vsel %vm512, %v1102, 0.0
        %v1121 = vsel %vm511, %v1106, 0.0
        %v1122 = vsel %vm512, %v1106, 0.0
        %v1123 = vsel %vm511, %v1110, 0.0
        %v1124 = vsel %vm512, %v1110, 0.0
        %v1125 = vsel %vm511, %v1114, 0.0
        %v1126 = vsel %vm512, %v1114, 0.0
        %v1127 = vsel %vm541, %v1119, -inf
        %1128 = vmax.xlane.f32.xlu0 %v1127
        %v1129 = vpop.xlane.xlu0 %1128
        %v1130 = vsel %vm541, %v1120, -inf
        %1131 = vmax.xlane.f32.xlu0 %v1130
        %v1132 = vpop.xlane.xlu0 %1131
        %v1133 = vsel %vm541, %v1121, -inf
        %1134 = vmax.xlane.f32.xlu0 %v1133
        %v1135 = vpop.xlane.xlu0 %1134
        %v1136 = vsel %vm541, %v1122, -inf
        %1137 = vmax.xlane.f32.xlu0 %v1136
        %v1138 = vpop.xlane.xlu0 %1137
        %v1139 = vsel %vm541, %v1123, -inf
        %1140 = vmax.xlane.f32.xlu0 %v1139
        %v1141 = vpop.xlane.xlu0 %1140
        %v1142 = vsel %vm541, %v1124, -inf
        %1143 = vmax.xlane.f32.xlu0 %v1142
        %v1144 = vpop.xlane.xlu0 %1143
        %v1145 = vsel %vm541, %v1125, -inf
        %1146 = vmax.xlane.f32.xlu0 %v1145
        %v1147 = vpop.xlane.xlu0 %1146
        %v1148 = vsel %vm541, %v1126, -inf
        %1149 = vmax.xlane.f32.xlu0 %v1148
        %v1150 = vpop.xlane.xlu0 %1149
        %v1159 = vlaneseq
        %v1160 = vshrl.u32 %v1159, 7
        %v1161 = vsub.s32 %v331, %v1160
        %v1162 = vrot.slane %v1129, %v1161
        %v1163 = vlaneseq
        %v1164 = vshrl.u32 %v1163, 7
        %v1165 = vsub.s32 %v578, %v1164
        %v1166 = vrot.slane %v1132, %v1165
        %v1167 = vsel %vm583, %v1166, %v1162
        %v1168 = vlaneseq
        %v1169 = vshrl.u32 %v1168, 7
        %v1170 = vsub.s32 %v331, %v1169
        %v1171 = vrot.slane %v1135, %v1170
        %v1172 = vlaneseq
        %v1173 = vshrl.u32 %v1172, 7
        %v1174 = vsub.s32 %v578, %v1173
        %v1175 = vrot.slane %v1138, %v1174
        %v1176 = vsel %vm583, %v1175, %v1171
        %v1177 = vlaneseq
        %v1178 = vshrl.u32 %v1177, 7
        %v1179 = vsub.s32 %v331, %v1178
        %v1180 = vrot.slane %v1141, %v1179
        %v1181 = vlaneseq
        %v1182 = vshrl.u32 %v1181, 7
        %v1183 = vsub.s32 %v578, %v1182
        %v1184 = vrot.slane %v1144, %v1183
        %v1185 = vsel %vm583, %v1184, %v1180
        %v1186 = vlaneseq
        %v1187 = vshrl.u32 %v1186, 7
        %v1188 = vsub.s32 %v331, %v1187
        %v1189 = vrot.slane %v1147, %v1188
        %v1190 = vlaneseq
        %v1191 = vshrl.u32 %v1190, 7
        %v1192 = vsub.s32 %v578, %v1191
        %v1193 = vrot.slane %v1150, %v1192
        %v1194 = vsel %vm583, %v1193, %v1189
        %v1195 = vsel %vm612, %v1176, %v1167
        %v1196 = vsel %vm614, %v1185, %v1195
        %v1197 = vsel %vm616, %v1194, %v1196
        %v1198 = vsel %vm247, %v1197, 0
        %1200 = vmatprep.subr.mxu0 0.0
        %1201 = vmatpush1.msra.mxu0 0.0
        %1202 = vmatprep.subr.mxu0 0.0
        %1203 = vmatpush1.msra.mxu0 0.0
        %1204 = vmatprep.subr.mxu0 0.0
        %1205 = vmatpush1.msra.mxu0 0.0
        %1206 = vmatprep.subr.mxu0 0.0
        %1207 = vmatpush1.msra.mxu0 0.0
        %1208 = vmatprep.subr.mxu0 0.0
        %1209 = vmatpush1.msra.mxu0 0.0
        %1210 = vmatprep.subr.mxu0 0.0
        %1211 = vmatpush1.msra.mxu0 0.0
        %1212 = vmatprep.subr.mxu0 0.0
        %1213 = vmatpush1.msra.mxu0 0.0
        %1214 = vmatprep.subr.mxu0 0.0
        %1215 = vmatpush1.msra.mxu0 0.0
        %1216 = vmatprep.subr.mxu0 0.0
        %1217 = vmatpush1.msra.mxu0 0.0
        %1218 = vmatprep.subr.mxu0 0.0
        %1219 = vmatpush1.msra.mxu0 0.0
        %1220 = vmatprep.subr.mxu0 0.0
        %1221 = vmatpush1.msra.mxu0 0.0
        %1222 = vmatprep.subr.mxu0 0.0
        %1223 = vmatpush1.msra.mxu0 0.0
        %1224 = vmatprep.subr.mxu0 0.0
        %1225 = vmatpush1.msra.mxu0 0.0
        %1226 = vmatprep.subr.mxu0 0.0
        %1227 = vmatpush1.msra.mxu0 0.0
        %1228 = vmatprep.subr.mxu0 0.0
        %1229 = vmatpush1.msra.mxu0 0.0
        %1230 = vmatprep.subr.mxu0 0.0
        %1231 = vmatpush1.msra.mxu0 %v1198
        %1232 = vmatprep.subr.mxu0 0.0
        %1233 = vmatpush2.msra.mxu0 0.0
        %1234 = vmatprep.subr.mxu0 0.0
        %1235 = vmatpush2.msra.mxu0 0.0
        %1236 = vmatprep.subr.mxu0 0.0
        %1237 = vmatpush2.msra.mxu0 0.0
        %1238 = vmatprep.subr.mxu0 0.0
        %1239 = vmatpush2.msra.mxu0 0.0
        %1240 = vmatprep.subr.mxu0 0.0
        %1241 = vmatpush2.msra.mxu0 0.0
        %1242 = vmatprep.subr.mxu0 0.0
        %1243 = vmatpush2.msra.mxu0 0.0
        %1244 = vmatprep.subr.mxu0 0.0
        %1245 = vmatpush2.msra.mxu0 0.0
        %1246 = vmatprep.subr.mxu0 0.0
        %1247 = vmatpush2.msra.mxu0 0.0
        %1248 = vmatprep.subr.mxu0 0.0
        %1249 = vmatpush2.msra.mxu0 0.0
        %1250 = vmatprep.subr.mxu0 0.0
        %1251 = vmatpush2.msra.mxu0 0.0
        %1252 = vmatprep.subr.mxu0 0.0
        %1253 = vmatpush2.msra.mxu0 0.0
        %1254 = vmatprep.subr.mxu0 0.0
        %1255 = vmatpush2.msra.mxu0 0.0
        %1256 = vmatprep.subr.mxu0 0.0
        %1257 = vmatpush2.msra.mxu0 0.0
        %1258 = vmatprep.subr.mxu0 0.0
        %1259 = vmatpush2.msra.mxu0 0.0
        %1260 = vmatprep.subr.mxu0 0.0
        %1261 = vmatpush2.msra.mxu0 0.0
        %1262 = vmatprep.subr.mxu0 0.0
        %1263 = vmatpush2.msra.mxu0 0.0
        %1264 = vmatprep.mubr.f32.mxu0 0.0
        %1265 = vmatmul.mubr.f32.gmra.mxu0 %v618
        %v1266 = vpop.f32.mrf.mxu0
        %v1267 = vadd.f32 0.0, %v1266
        %v1268 = vpop.f32.mrf.mxu0
        %1269 = vdwg.mxu0
        %1270 = vmatprep.subr.mxu0 0.0
        %1271 = vmatpush1.msra.mxu0 0.0
        %1272 = vmatprep.subr.mxu0 0.0
        %1273 = vmatpush1.msra.mxu0 0.0
        %1274 = vmatprep.subr.mxu0 0.0
        %1275 = vmatpush1.msra.mxu0 0.0
        %1276 = vmatprep.subr.mxu0 0.0
        %1277 = vmatpush1.msra.mxu0 0.0
        %1278 = vmatprep.subr.mxu0 0.0
        %1279 = vmatpush1.msra.mxu0 0.0
        %1280 = vmatprep.subr.mxu0 0.0
        %1281 = vmatpush1.msra.mxu0 0.0
        %1282 = vmatprep.subr.mxu0 0.0
        %1283 = vmatpush1.msra.mxu0 0.0
        %1284 = vmatprep.subr.mxu0 0.0
        %1285 = vmatpush1.msra.mxu0 0.0
        %1286 = vmatprep.subr.mxu0 0.0
        %1287 = vmatpush1.msra.mxu0 0.0
        %1288 = vmatprep.subr.mxu0 0.0
        %1289 = vmatpush1.msra.mxu0 0.0
        %1290 = vmatprep.subr.mxu0 0.0
        %1291 = vmatpush1.msra.mxu0 0.0
        %1292 = vmatprep.subr.mxu0 0.0
        %1293 = vmatpush1.msra.mxu0 0.0
        %1294 = vmatprep.subr.mxu0 0.0
        %1295 = vmatpush1.msra.mxu0 0.0
        %1296 = vmatprep.subr.mxu0 0.0
        %1297 = vmatpush1.msra.mxu0 0.0
        %1298 = vmatprep.subr.mxu0 0.0
        %1299 = vmatpush1.msra.mxu0 0.0
        %1300 = vmatprep.subr.mxu0 0.0
        %1301 = vmatpush1.msra.mxu0 %v929
        %1302 = vmatprep.subr.mxu0 0.0
        %1303 = vmatpush2.msra.mxu0 0.0
        %1304 = vmatprep.subr.mxu0 0.0
        %1305 = vmatpush2.msra.mxu0 0.0
        %1306 = vmatprep.subr.mxu0 0.0
        %1307 = vmatpush2.msra.mxu0 0.0
        %1308 = vmatprep.subr.mxu0 0.0
        %1309 = vmatpush2.msra.mxu0 0.0
        %1310 = vmatprep.subr.mxu0 0.0
        %1311 = vmatpush2.msra.mxu0 0.0
        %1312 = vmatprep.subr.mxu0 0.0
        %1313 = vmatpush2.msra.mxu0 0.0
        %1314 = vmatprep.subr.mxu0 0.0
        %1315 = vmatpush2.msra.mxu0 0.0
        %1316 = vmatprep.subr.mxu0 0.0
        %1317 = vmatpush2.msra.mxu0 0.0
        %1318 = vmatprep.subr.mxu0 0.0
        %1319 = vmatpush2.msra.mxu0 0.0
        %1320 = vmatprep.subr.mxu0 0.0
        %1321 = vmatpush2.msra.mxu0 0.0
        %1322 = vmatprep.subr.mxu0 0.0
        %1323 = vmatpush2.msra.mxu0 0.0
        %1324 = vmatprep.subr.mxu0 0.0
        %1325 = vmatpush2.msra.mxu0 0.0
        %1326 = vmatprep.subr.mxu0 0.0
        %1327 = vmatpush2.msra.mxu0 0.0
        %1328 = vmatprep.subr.mxu0 0.0
        %1329 = vmatpush2.msra.mxu0 0.0
        %1330 = vmatprep.subr.mxu0 0.0
        %1331 = vmatpush2.msra.mxu0 0.0
        %1332 = vmatprep.subr.mxu0 0.0
        %1333 = vmatpush2.msra.mxu0 0.0
        %1334 = vmatprep.mubr.f32.mxu0 0.0
        %1335 = vmatmul.mubr.f32.gmra.mxu0 %v693
        %v1336 = vpop.f32.mrf.mxu0
        %v1337 = vadd.f32 %v1267, %v1336
        %v1338 = vpop.f32.mrf.mxu0
        %1339 = vdwg.mxu0
        %v1340 = vadd.f32 %v1337, %v765
        %v1341 = vmax.f32 %v1340, 0.0
        %v1343 = vsel %vm247, %v1341, 0
        %1345 = vmatprep.subr.mxu0 0.0
        %1346 = vmatpush1.msra.mxu0 0.0
        %1347 = vmatprep.subr.mxu0 0.0
        %1348 = vmatpush1.msra.mxu0 0.0
        %1349 = vmatprep.subr.mxu0 0.0
        %1350 = vmatpush1.msra.mxu0 0.0
        %1351 = vmatprep.subr.mxu0 0.0
        %1352 = vmatpush1.msra.mxu0 0.0
        %1353 = vmatprep.subr.mxu0 0.0
        %1354 = vmatpush1.msra.mxu0 0.0
        %1355 = vmatprep.subr.mxu0 0.0
        %1356 = vmatpush1.msra.mxu0 0.0
        %1357 = vmatprep.subr.mxu0 0.0
        %1358 = vmatpush1.msra.mxu0 0.0
        %1359 = vmatprep.subr.mxu0 0.0
        %1360 = vmatpush1.msra.mxu0 0.0
        %1361 = vmatprep.subr.mxu0 0.0
        %1362 = vmatpush1.msra.mxu0 0.0
        %1363 = vmatprep.subr.mxu0 0.0
        %1364 = vmatpush1.msra.mxu0 0.0
        %1365 = vmatprep.subr.mxu0 0.0
        %1366 = vmatpush1.msra.mxu0 0.0
        %1367 = vmatprep.subr.mxu0 0.0
        %1368 = vmatpush1.msra.mxu0 0.0
        %1369 = vmatprep.subr.mxu0 0.0
        %1370 = vmatpush1.msra.mxu0 0.0
        %1371 = vmatprep.subr.mxu0 0.0
        %1372 = vmatpush1.msra.mxu0 0.0
        %1373 = vmatprep.subr.mxu0 0.0
        %1374 = vmatpush1.msra.mxu0 0.0
        %1375 = vmatprep.subr.mxu0 0.0
        %1376 = vmatpush1.msra.mxu0 %v1343
        %1377 = vmatprep.subr.mxu0 0.0
        %1378 = vmatpush2.msra.mxu0 0.0
        %1379 = vmatprep.subr.mxu0 0.0
        %1380 = vmatpush2.msra.mxu0 0.0
        %1381 = vmatprep.subr.mxu0 0.0
        %1382 = vmatpush2.msra.mxu0 0.0
        %1383 = vmatprep.subr.mxu0 0.0
        %1384 = vmatpush2.msra.mxu0 0.0
        %1385 = vmatprep.subr.mxu0 0.0
        %1386 = vmatpush2.msra.mxu0 0.0
        %1387 = vmatprep.subr.mxu0 0.0
        %1388 = vmatpush2.msra.mxu0 0.0
        %1389 = vmatprep.subr.mxu0 0.0
        %1390 = vmatpush2.msra.mxu0 0.0
        %1391 = vmatprep.subr.mxu0 0.0
        %1392 = vmatpush2.msra.mxu0 0.0
        %1393 = vmatprep.subr.mxu0 0.0
        %1394 = vmatpush2.msra.mxu0 0.0
        %1395 = vmatprep.subr.mxu0 0.0
        %1396 = vmatpush2.msra.mxu0 0.0
        %1397 = vmatprep.subr.mxu0 0.0
        %1398 = vmatpush2.msra.mxu0 0.0
        %1399 = vmatprep.subr.mxu0 0.0
        %1400 = vmatpush2.msra.mxu0 0.0
        %1401 = vmatprep.subr.mxu0 0.0
        %1402 = vmatpush2.msra.mxu0 0.0
        %1403 = vmatprep.subr.mxu0 0.0
        %1404 = vmatpush2.msra.mxu0 0.0
        %1405 = vmatprep.subr.mxu0 0.0
        %1406 = vmatpush2.msra.mxu0 0.0
        %1407 = vmatprep.subr.mxu0 0.0
        %1408 = vmatpush2.msra.mxu0 0.0
        %1409 = vmatprep.mubr.f32.mxu0 0.0
        %1410 = vmatmul.mubr.f32.gmra.mxu0 %v770
        %v1411 = vpop.f32.mrf.mxu0
        %v1412 = vadd.f32 %v328, %v1411
        %v1413 = vpop.f32.mrf.mxu0
        %1414 = vdwg.mxu0
        %v1415 = vmul.f32 %v1412, %v1412
        %v1416 = vsel %vm409, %v1415, 0.0
        %v1417 = vrot.slane %v1416, 4
        %v1418 = vadd.f32 %v1416, %v1417
        %v1419 = vrot.slane %v1418, 2
        %v1420 = vadd.f32 %v1418, %v1419
        %v1421 = vrot.slane %v1420, 1
        %v1422 = vadd.f32 %v1420, %v1421
        %v1423 = vrsqrt.pop %v1422
        %v1424 = vmin.f32 %v1423, 1.0
        %v1425 = vmul.f32 %v1412, %v1424
        %1426 = vmatprep.subr.mxu0 0.0
        %1427 = vmatpush1.msra.mxu0 0.0
        %1428 = vmatprep.subr.mxu0 0.0
        %1429 = vmatpush1.msra.mxu0 0.0
        %1430 = vmatprep.subr.mxu0 0.0
        %1431 = vmatpush1.msra.mxu0 0.0
        %1432 = vmatprep.subr.mxu0 0.0
        %1433 = vmatpush1.msra.mxu0 0.0
        %1434 = vmatprep.subr.mxu0 0.0
        %1435 = vmatpush1.msra.mxu0 0.0
        %1436 = vmatprep.subr.mxu0 0.0
        %1437 = vmatpush1.msra.mxu0 0.0
        %1438 = vmatprep.subr.mxu0 0.0
        %1439 = vmatpush1.msra.mxu0 0.0
        %1440 = vmatprep.subr.mxu0 0.0
        %1441 = vmatpush1.msra.mxu0 0.0
        %1442 = vmatprep.subr.mxu0 0.0
        %1443 = vmatpush1.msra.mxu0 0.0
        %1444 = vmatprep.subr.mxu0 0.0
        %1445 = vmatpush1.msra.mxu0 0.0
        %1446 = vmatprep.subr.mxu0 0.0
        %1447 = vmatpush1.msra.mxu0 0.0
        %1448 = vmatprep.subr.mxu0 0.0
        %1449 = vmatpush1.msra.mxu0 0.0
        %1450 = vmatprep.subr.mxu0 0.0
        %1451 = vmatpush1.msra.mxu0 0.0
        %1452 = vmatprep.subr.mxu0 0.0
        %1453 = vmatpush1.msra.mxu0 0.0
        %1454 = vmatprep.subr.mxu0 0.0
        %1455 = vmatpush1.msra.mxu0 0.0
        %1456 = vmatprep.subr.mxu0 0.0
        %1457 = vmatpush1.msra.mxu0 %v929
        %1458 = vmatprep.subr.mxu0 0.0
        %1459 = vmatpush2.msra.mxu0 0.0
        %1460 = vmatprep.subr.mxu0 0.0
        %1461 = vmatpush2.msra.mxu0 0.0
        %1462 = vmatprep.subr.mxu0 0.0
        %1463 = vmatpush2.msra.mxu0 0.0
        %1464 = vmatprep.subr.mxu0 0.0
        %1465 = vmatpush2.msra.mxu0 0.0
        %1466 = vmatprep.subr.mxu0 0.0
        %1467 = vmatpush2.msra.mxu0 0.0
        %1468 = vmatprep.subr.mxu0 0.0
        %1469 = vmatpush2.msra.mxu0 0.0
        %1470 = vmatprep.subr.mxu0 0.0
        %1471 = vmatpush2.msra.mxu0 0.0
        %1472 = vmatprep.subr.mxu0 0.0
        %1473 = vmatpush2.msra.mxu0 0.0
        %1474 = vmatprep.subr.mxu0 0.0
        %1475 = vmatpush2.msra.mxu0 0.0
        %1476 = vmatprep.subr.mxu0 0.0
        %1477 = vmatpush2.msra.mxu0 0.0
        %1478 = vmatprep.subr.mxu0 0.0
        %1479 = vmatpush2.msra.mxu0 0.0
        %1480 = vmatprep.subr.mxu0 0.0
        %1481 = vmatpush2.msra.mxu0 0.0
        %1482 = vmatprep.subr.mxu0 0.0
        %1483 = vmatpush2.msra.mxu0 0.0
        %1484 = vmatprep.subr.mxu0 0.0
        %1485 = vmatpush2.msra.mxu0 0.0
        %1486 = vmatprep.subr.mxu0 0.0
        %1487 = vmatpush2.msra.mxu0 0.0
        %1488 = vmatprep.subr.mxu0 0.0
        %1489 = vmatpush2.msra.mxu0 0.0
        %1490 = vmatprep.mubr.f32.mxu0 0.0
        %1491 = vmatmul.mubr.f32.gmra.mxu0 %v857
        %v1492 = vpop.f32.mrf.mxu0
        %v1493 = vadd.f32 0.0, %v1492
        %v1494 = vpop.f32.mrf.mxu0
        %1495 = vdwg.mxu0
        %v1496 = vadd.f32 %v1425, %v1493
        %1497 = vmatprep.subr.mxu0 0.0
        %1498 = vmatpush1.msra.mxu0 0.0
        %1499 = vmatprep.subr.mxu0 0.0
        %1500 = vmatpush1.msra.mxu0 0.0
        %1501 = vmatprep.subr.mxu0 0.0
        %1502 = vmatpush1.msra.mxu0 0.0
        %1503 = vmatprep.subr.mxu0 0.0
        %1504 = vmatpush1.msra.mxu0 0.0
        %1505 = vmatprep.subr.mxu0 0.0
        %1506 = vmatpush1.msra.mxu0 0.0
        %1507 = vmatprep.subr.mxu0 0.0
        %1508 = vmatpush1.msra.mxu0 0.0
        %1509 = vmatprep.subr.mxu0 0.0
        %1510 = vmatpush1.msra.mxu0 0.0
        %1511 = vmatprep.subr.mxu0 0.0
        %1512 = vmatpush1.msra.mxu0 0.0
        %1513 = vmatprep.subr.mxu0 0.0
        %1514 = vmatpush1.msra.mxu0 0.0
        %1515 = vmatprep.subr.mxu0 0.0
        %1516 = vmatpush1.msra.mxu0 0.0
        %1517 = vmatprep.subr.mxu0 0.0
        %1518 = vmatpush1.msra.mxu0 0.0
        %1519 = vmatprep.subr.mxu0 0.0
        %1520 = vmatpush1.msra.mxu0 0.0
        %1521 = vmatprep.subr.mxu0 0.0
        %1522 = vmatpush1.msra.mxu0 0.0
        %1523 = vmatprep.subr.mxu0 0.0
        %1524 = vmatpush1.msra.mxu0 0.0
        %1525 = vmatprep.subr.mxu0 0.0
        %1526 = vmatpush1.msra.mxu0 0.0
        %1527 = vmatprep.subr.mxu0 0.0
        %1528 = vmatpush1.msra.mxu0 %v1496
        %1529 = vmatprep.subr.mxu0 0.0
        %1530 = vmatpush2.msra.mxu0 0.0
        %1531 = vmatprep.subr.mxu0 0.0
        %1532 = vmatpush2.msra.mxu0 0.0
        %1533 = vmatprep.subr.mxu0 0.0
        %1534 = vmatpush2.msra.mxu0 0.0
        %1535 = vmatprep.subr.mxu0 0.0
        %1536 = vmatpush2.msra.mxu0 0.0
        %1537 = vmatprep.subr.mxu0 0.0
        %1538 = vmatpush2.msra.mxu0 0.0
        %1539 = vmatprep.subr.mxu0 0.0
        %1540 = vmatpush2.msra.mxu0 0.0
        %1541 = vmatprep.subr.mxu0 0.0
        %1542 = vmatpush2.msra.mxu0 0.0
        %1543 = vmatprep.subr.mxu0 0.0
        %1544 = vmatpush2.msra.mxu0 0.0
        %1545 = vmatprep.subr.mxu0 0.0
        %1546 = vmatpush2.msra.mxu0 0.0
        %1547 = vmatprep.subr.mxu0 0.0
        %1548 = vmatpush2.msra.mxu0 0.0
        %1549 = vmatprep.subr.mxu0 0.0
        %1550 = vmatpush2.msra.mxu0 0.0
        %1551 = vmatprep.subr.mxu0 0.0
        %1552 = vmatpush2.msra.mxu0 0.0
        %1553 = vmatprep.subr.mxu0 0.0
        %1554 = vmatpush2.msra.mxu0 0.0
        %1555 = vmatprep.subr.mxu0 0.0
        %1556 = vmatpush2.msra.mxu0 0.0
        %1557 = vmatprep.subr.mxu0 0.0
        %1558 = vmatpush2.msra.mxu0 0.0
        %1559 = vmatprep.subr.mxu0 0.0
        %1560 = vmatpush2.msra.mxu0 0.0
        %1561 = vmatprep.mubr.f32.mxu0 0.0
        %1562 = vmatmul.mubr.f32.gmra.mxu0 %v337
        %v1563 = vpop.f32.mrf.mxu0
        %v1564 = vadd.f32 0.0, %v1563
        %v1565 = vpop.f32.mrf.mxu0
        %1566 = vdwg.mxu0
        %v1568 = vsel %vm409, %v1564, 0
        %1570 = vmatprep.subr.mxu0 0.0
        %1571 = vmatpush1.msra.mxu0 0.0
        %1572 = vmatprep.subr.mxu0 0.0
        %1573 = vmatpush1.msra.mxu0 0.0
        %1574 = vmatprep.subr.mxu0 0.0
        %1575 = vmatpush1.msra.mxu0 0.0
        %1576 = vmatprep.subr.mxu0 0.0
        %1577 = vmatpush1.msra.mxu0 0.0
        %1578 = vmatprep.subr.mxu0 0.0
        %1579 = vmatpush1.msra.mxu0 0.0
        %1580 = vmatprep.subr.mxu0 0.0
        %1581 = vmatpush1.msra.mxu0 0.0
        %1582 = vmatprep.subr.mxu0 0.0
        %1583 = vmatpush1.msra.mxu0 0.0
        %1584 = vmatprep.subr.mxu0 0.0
        %1585 = vmatpush1.msra.mxu0 0.0
        %1586 = vmatprep.subr.mxu0 0.0
        %1587 = vmatpush1.msra.mxu0 0.0
        %1588 = vmatprep.subr.mxu0 0.0
        %1589 = vmatpush1.msra.mxu0 0.0
        %1590 = vmatprep.subr.mxu0 0.0
        %1591 = vmatpush1.msra.mxu0 0.0
        %1592 = vmatprep.subr.mxu0 0.0
        %1593 = vmatpush1.msra.mxu0 0.0
        %1594 = vmatprep.subr.mxu0 0.0
        %1595 = vmatpush1.msra.mxu0 0.0
        %1596 = vmatprep.subr.mxu0 0.0
        %1597 = vmatpush1.msra.mxu0 0.0
        %1598 = vmatprep.subr.mxu0 0.0
        %1599 = vmatpush1.msra.mxu0 %v230
        %1600 = vmatprep.subr.mxu0 0.0
        %1601 = vmatpush1.msra.mxu0 %v229
        %1602 = vmatprep.subr.mxu0 0.0
        %1603 = vmatpush2.msra.mxu0 0.0
        %1604 = vmatprep.subr.mxu0 0.0
        %1605 = vmatpush2.msra.mxu0 0.0
        %1606 = vmatprep.subr.mxu0 0.0
        %1607 = vmatpush2.msra.mxu0 0.0
        %1608 = vmatprep.subr.mxu0 0.0
        %1609 = vmatpush2.msra.mxu0 0.0
        %1610 = vmatprep.subr.mxu0 0.0
        %1611 = vmatpush2.msra.mxu0 0.0
        %1612 = vmatprep.subr.mxu0 0.0
        %1613 = vmatpush2.msra.mxu0 0.0
        %1614 = vmatprep.subr.mxu0 0.0
        %1615 = vmatpush2.msra.mxu0 0.0
        %1616 = vmatprep.subr.mxu0 0.0
        %1617 = vmatpush2.msra.mxu0 0.0
        %1618 = vmatprep.subr.mxu0 0.0
        %1619 = vmatpush2.msra.mxu0 0.0
        %1620 = vmatprep.subr.mxu0 0.0
        %1621 = vmatpush2.msra.mxu0 0.0
        %1622 = vmatprep.subr.mxu0 0.0
        %1623 = vmatpush2.msra.mxu0 0.0
        %1624 = vmatprep.subr.mxu0 0.0
        %1625 = vmatpush2.msra.mxu0 0.0
        %1626 = vmatprep.subr.mxu0 0.0
        %1627 = vmatpush2.msra.mxu0 0.0
        %1628 = vmatprep.subr.mxu0 0.0
        %1629 = vmatpush2.msra.mxu0 0.0
        %1630 = vmatprep.subr.mxu0 0.0
        %1631 = vmatpush2.msra.mxu0 0.0
        %1632 = vmatprep.subr.mxu0 0.0
        %1633 = vmatpush2.msra.mxu0 0.0
        %1634 = vmatprep.mubr.f32.mxu0 0.0
        %1635 = vmatmul.mubr.f32.gmra.mxu0 %v1568
        %v1636 = vpop.f32.mrf.mxu0
        %v1637 = vadd.f32 %v318, %v1636
        %v1638 = vpop.f32.mrf.mxu0
        %1639 = vdwg.mxu0
        %v1640 = vmax.f32 %v1637, 0.0
        %v1643 = vunpack.c.l.s4 1966171168
        %v1644 = vunpack.c.0.s8 %v1643
        %v1645 = vlaneseq
        %v1646 = vshrl.u32 %v1645, 7
        %v1647 = vsub.s32 %v1644, %v1646
        %v1648 = vrot.slane %v1640, %v1647
        %v1649 = vcombine.high %v1648, %v1648
        %v1651 = vunpack.c.l.s4 1966171168
        %v1652 = vunpack.c.0.s8 %v1651
        %v1653 = vlaneseq
        %v1654 = vshrl.u32 %v1653, 7
        %v1655 = vsub.s32 %v1652, %v1654
        %v1656 = vrot.slane %v1648, %v1655
        %v1658 = vunpack.c.l.s4 1966171168
        %v1659 = vunpack.c.0.s8 %v1658
        %v1660 = vlaneseq
        %v1661 = vshrl.u32 %v1660, 7
        %v1662 = vsub.s32 %v1659, %v1661
        %v1663 = vrot.slane %v1649, %v1662
        %v1664 = vcombine.high %v1656, %v1656
        %v1665 = vcombine.high %v1663, %v1663
        %v1666 = vlaneseq
        %v1667 = vshrl.u32 %v1666, 7
        %v1668 = vsub.s32 0, %v1667
        %v1669 = vrot.slane %v1656, %v1668
        %v1670 = vlaneseq
        %v1671 = vshrl.u32 %v1670, 7
        %v1672 = vsub.s32 0, %v1671
        %v1673 = vrot.slane %v1663, %v1672
        %v1674 = vlaneseq
        %v1675 = vshrl.u32 %v1674, 7
        %v1676 = vsub.s32 0, %v1675
        %v1677 = vrot.slane %v1664, %v1676
        %v1678 = vlaneseq
        %v1679 = vshrl.u32 %v1678, 7
        %v1680 = vsub.s32 0, %v1679
        %v1681 = vrot.slane %v1665, %v1680
        %v1686 = vsel %vm511, %v1669, 0.0
        %v1687 = vsel %vm512, %v1669, 0.0
        %v1688 = vsel %vm511, %v1673, 0.0
        %v1689 = vsel %vm512, %v1673, 0.0
        %v1690 = vsel %vm511, %v1677, 0.0
        %v1691 = vsel %vm512, %v1677, 0.0
        %v1692 = vsel %vm511, %v1681, 0.0
        %v1693 = vsel %vm512, %v1681, 0.0
        %v1694 = vsel %vm541, %v1686, -inf
        %1695 = vmax.xlane.f32.xlu0 %v1694
        %v1696 = vpop.xlane.xlu0 %1695
        %v1697 = vsel %vm541, %v1687, -inf
        %1698 = vmax.xlane.f32.xlu0 %v1697
        %v1699 = vpop.xlane.xlu0 %1698
        %v1700 = vsel %vm541, %v1688, -inf
        %1701 = vmax.xlane.f32.xlu0 %v1700
        %v1702 = vpop.xlane.xlu0 %1701
        %v1703 = vsel %vm541, %v1689, -inf
        %1704 = vmax.xlane.f32.xlu0 %v1703
        %v1705 = vpop.xlane.xlu0 %1704
        %v1706 = vsel %vm541, %v1690, -inf
        %1707 = vmax.xlane.f32.xlu0 %v1706
        %v1708 = vpop.xlane.xlu0 %1707
        %v1709 = vsel %vm541, %v1691, -inf
        %1710 = vmax.xlane.f32.xlu0 %v1709
        %v1711 = vpop.xlane.xlu0 %1710
        %v1712 = vsel %vm541, %v1692, -inf
        %1713 = vmax.xlane.f32.xlu0 %v1712
        %v1714 = vpop.xlane.xlu0 %1713
        %v1715 = vsel %vm541, %v1693, -inf
        %1716 = vmax.xlane.f32.xlu0 %v1715
        %v1717 = vpop.xlane.xlu0 %1716
        %v1726 = vlaneseq
        %v1727 = vshrl.u32 %v1726, 7
        %v1728 = vsub.s32 %v331, %v1727
        %v1729 = vrot.slane %v1696, %v1728
        %v1730 = vlaneseq
        %v1731 = vshrl.u32 %v1730, 7
        %v1732 = vsub.s32 %v578, %v1731
        %v1733 = vrot.slane %v1699, %v1732
        %v1734 = vsel %vm583, %v1733, %v1729
        %v1735 = vlaneseq
        %v1736 = vshrl.u32 %v1735, 7
        %v1737 = vsub.s32 %v331, %v1736
        %v1738 = vrot.slane %v1702, %v1737
        %v1739 = vlaneseq
        %v1740 = vshrl.u32 %v1739, 7
        %v1741 = vsub.s32 %v578, %v1740
        %v1742 = vrot.slane %v1705, %v1741
        %v1743 = vsel %vm583, %v1742, %v1738
        %v1744 = vlaneseq
        %v1745 = vshrl.u32 %v1744, 7
        %v1746 = vsub.s32 %v331, %v1745
        %v1747 = vrot.slane %v1708, %v1746
        %v1748 = vlaneseq
        %v1749 = vshrl.u32 %v1748, 7
        %v1750 = vsub.s32 %v578, %v1749
        %v1751 = vrot.slane %v1711, %v1750
        %v1752 = vsel %vm583, %v1751, %v1747
        %v1753 = vlaneseq
        %v1754 = vshrl.u32 %v1753, 7
        %v1755 = vsub.s32 %v331, %v1754
        %v1756 = vrot.slane %v1714, %v1755
        %v1757 = vlaneseq
        %v1758 = vshrl.u32 %v1757, 7
        %v1759 = vsub.s32 %v578, %v1758
        %v1760 = vrot.slane %v1717, %v1759
        %v1761 = vsel %vm583, %v1760, %v1756
        %v1762 = vsel %vm612, %v1743, %v1734
        %v1763 = vsel %vm614, %v1752, %v1762
        %v1764 = vsel %vm616, %v1761, %v1763
        %v1765 = vsel %vm247, %v1764, 0
        %1767 = vmatprep.subr.mxu0 0.0
        %1768 = vmatpush1.msra.mxu0 0.0
        %1769 = vmatprep.subr.mxu0 0.0
        %1770 = vmatpush1.msra.mxu0 0.0
        %1771 = vmatprep.subr.mxu0 0.0
        %1772 = vmatpush1.msra.mxu0 0.0
        %1773 = vmatprep.subr.mxu0 0.0
        %1774 = vmatpush1.msra.mxu0 0.0
        %1775 = vmatprep.subr.mxu0 0.0
        %1776 = vmatpush1.msra.mxu0 0.0
        %1777 = vmatprep.subr.mxu0 0.0
        %1778 = vmatpush1.msra.mxu0 0.0
        %1779 = vmatprep.subr.mxu0 0.0
        %1780 = vmatpush1.msra.mxu0 0.0
        %1781 = vmatprep.subr.mxu0 0.0
        %1782 = vmatpush1.msra.mxu0 0.0
        %1783 = vmatprep.subr.mxu0 0.0
        %1784 = vmatpush1.msra.mxu0 0.0
        %1785 = vmatprep.subr.mxu0 0.0
        %1786 = vmatpush1.msra.mxu0 0.0
        %1787 = vmatprep.subr.mxu0 0.0
        %1788 = vmatpush1.msra.mxu0 0.0
        %1789 = vmatprep.subr.mxu0 0.0
        %1790 = vmatpush1.msra.mxu0 0.0
        %1791 = vmatprep.subr.mxu0 0.0
        %1792 = vmatpush1.msra.mxu0 0.0
        %1793 = vmatprep.subr.mxu0 0.0
        %1794 = vmatpush1.msra.mxu0 0.0
        %1795 = vmatprep.subr.mxu0 0.0
        %1796 = vmatpush1.msra.mxu0 0.0
        %1797 = vmatprep.subr.mxu0 0.0
        %1798 = vmatpush1.msra.mxu0 %v1765
        %1799 = vmatprep.subr.mxu0 0.0
        %1800 = vmatpush2.msra.mxu0 0.0
        %1801 = vmatprep.subr.mxu0 0.0
        %1802 = vmatpush2.msra.mxu0 0.0
        %1803 = vmatprep.subr.mxu0 0.0
        %1804 = vmatpush2.msra.mxu0 0.0
        %1805 = vmatprep.subr.mxu0 0.0
        %1806 = vmatpush2.msra.mxu0 0.0
        %1807 = vmatprep.subr.mxu0 0.0
        %1808 = vmatpush2.msra.mxu0 0.0
        %1809 = vmatprep.subr.mxu0 0.0
        %1810 = vmatpush2.msra.mxu0 0.0
        %1811 = vmatprep.subr.mxu0 0.0
        %1812 = vmatpush2.msra.mxu0 0.0
        %1813 = vmatprep.subr.mxu0 0.0
        %1814 = vmatpush2.msra.mxu0 0.0
        %1815 = vmatprep.subr.mxu0 0.0
        %1816 = vmatpush2.msra.mxu0 0.0
        %1817 = vmatprep.subr.mxu0 0.0
        %1818 = vmatpush2.msra.mxu0 0.0
        %1819 = vmatprep.subr.mxu0 0.0
        %1820 = vmatpush2.msra.mxu0 0.0
        %1821 = vmatprep.subr.mxu0 0.0
        %1822 = vmatpush2.msra.mxu0 0.0
        %1823 = vmatprep.subr.mxu0 0.0
        %1824 = vmatpush2.msra.mxu0 0.0
        %1825 = vmatprep.subr.mxu0 0.0
        %1826 = vmatpush2.msra.mxu0 0.0
        %1827 = vmatprep.subr.mxu0 0.0
        %1828 = vmatpush2.msra.mxu0 0.0
        %1829 = vmatprep.subr.mxu0 0.0
        %1830 = vmatpush2.msra.mxu0 0.0
        %1831 = vmatprep.mubr.f32.mxu0 0.0
        %1832 = vmatmul.mubr.f32.gmra.mxu0 %v618
        %v1833 = vpop.f32.mrf.mxu0
        %v1834 = vadd.f32 0.0, %v1833
        %v1835 = vpop.f32.mrf.mxu0
        %1836 = vdwg.mxu0
        %1837 = vmatprep.subr.mxu0 0.0
        %1838 = vmatpush1.msra.mxu0 0.0
        %1839 = vmatprep.subr.mxu0 0.0
        %1840 = vmatpush1.msra.mxu0 0.0
        %1841 = vmatprep.subr.mxu0 0.0
        %1842 = vmatpush1.msra.mxu0 0.0
        %1843 = vmatprep.subr.mxu0 0.0
        %1844 = vmatpush1.msra.mxu0 0.0
        %1845 = vmatprep.subr.mxu0 0.0
        %1846 = vmatpush1.msra.mxu0 0.0
        %1847 = vmatprep.subr.mxu0 0.0
        %1848 = vmatpush1.msra.mxu0 0.0
        %1849 = vmatprep.subr.mxu0 0.0
        %1850 = vmatpush1.msra.mxu0 0.0
        %1851 = vmatprep.subr.mxu0 0.0
        %1852 = vmatpush1.msra.mxu0 0.0
        %1853 = vmatprep.subr.mxu0 0.0
        %1854 = vmatpush1.msra.mxu0 0.0
        %1855 = vmatprep.subr.mxu0 0.0
        %1856 = vmatpush1.msra.mxu0 0.0
        %1857 = vmatprep.subr.mxu0 0.0
        %1858 = vmatpush1.msra.mxu0 0.0
        %1859 = vmatprep.subr.mxu0 0.0
        %1860 = vmatpush1.msra.mxu0 0.0
        %1861 = vmatprep.subr.mxu0 0.0
        %1862 = vmatpush1.msra.mxu0 0.0
        %1863 = vmatprep.subr.mxu0 0.0
        %1864 = vmatpush1.msra.mxu0 0.0
        %1865 = vmatprep.subr.mxu0 0.0
        %1866 = vmatpush1.msra.mxu0 0.0
        %1867 = vmatprep.subr.mxu0 0.0
        %1868 = vmatpush1.msra.mxu0 %v1496
        %1869 = vmatprep.subr.mxu0 0.0
        %1870 = vmatpush2.msra.mxu0 0.0
        %1871 = vmatprep.subr.mxu0 0.0
        %1872 = vmatpush2.msra.mxu0 0.0
        %1873 = vmatprep.subr.mxu0 0.0
        %1874 = vmatpush2.msra.mxu0 0.0
        %1875 = vmatprep.subr.mxu0 0.0
        %1876 = vmatpush2.msra.mxu0 0.0
        %1877 = vmatprep.subr.mxu0 0.0
        %1878 = vmatpush2.msra.mxu0 0.0
        %1879 = vmatprep.subr.mxu0 0.0
        %1880 = vmatpush2.msra.mxu0 0.0
        %1881 = vmatprep.subr.mxu0 0.0
        %1882 = vmatpush2.msra.mxu0 0.0
        %1883 = vmatprep.subr.mxu0 0.0
        %1884 = vmatpush2.msra.mxu0 0.0
        %1885 = vmatprep.subr.mxu0 0.0
        %1886 = vmatpush2.msra.mxu0 0.0
        %1887 = vmatprep.subr.mxu0 0.0
        %1888 = vmatpush2.msra.mxu0 0.0
        %1889 = vmatprep.subr.mxu0 0.0
        %1890 = vmatpush2.msra.mxu0 0.0
        %1891 = vmatprep.subr.mxu0 0.0
        %1892 = vmatpush2.msra.mxu0 0.0
        %1893 = vmatprep.subr.mxu0 0.0
        %1894 = vmatpush2.msra.mxu0 0.0
        %1895 = vmatprep.subr.mxu0 0.0
        %1896 = vmatpush2.msra.mxu0 0.0
        %1897 = vmatprep.subr.mxu0 0.0
        %1898 = vmatpush2.msra.mxu0 0.0
        %1899 = vmatprep.subr.mxu0 0.0
        %1900 = vmatpush2.msra.mxu0 0.0
        %1901 = vmatprep.mubr.f32.mxu0 0.0
        %1902 = vmatmul.mubr.f32.gmra.mxu0 %v693
        %v1903 = vpop.f32.mrf.mxu0
        %v1904 = vadd.f32 %v1834, %v1903
        %v1905 = vpop.f32.mrf.mxu0
        %1906 = vdwg.mxu0
        %v1907 = vadd.f32 %v1904, %v765
        %v1908 = vmax.f32 %v1907, 0.0
        %v1910 = vsel %vm247, %v1908, 0
        %1912 = vmatprep.subr.mxu0 0.0
        %1913 = vmatpush1.msra.mxu0 0.0
        %1914 = vmatprep.subr.mxu0 0.0
        %1915 = vmatpush1.msra.mxu0 0.0
        %1916 = vmatprep.subr.mxu0 0.0
        %1917 = vmatpush1.msra.mxu0 0.0
        %1918 = vmatprep.subr.mxu0 0.0
        %1919 = vmatpush1.msra.mxu0 0.0
        %1920 = vmatprep.subr.mxu0 0.0
        %1921 = vmatpush1.msra.mxu0 0.0
        %1922 = vmatprep.subr.mxu0 0.0
        %1923 = vmatpush1.msra.mxu0 0.0
        %1924 = vmatprep.subr.mxu0 0.0
        %1925 = vmatpush1.msra.mxu0 0.0
        %1926 = vmatprep.subr.mxu0 0.0
        %1927 = vmatpush1.msra.mxu0 0.0
        %1928 = vmatprep.subr.mxu0 0.0
        %1929 = vmatpush1.msra.mxu0 0.0
        %1930 = vmatprep.subr.mxu0 0.0
        %1931 = vmatpush1.msra.mxu0 0.0
        %1932 = vmatprep.subr.mxu0 0.0
        %1933 = vmatpush1.msra.mxu0 0.0
        %1934 = vmatprep.subr.mxu0 0.0
        %1935 = vmatpush1.msra.mxu0 0.0
        %1936 = vmatprep.subr.mxu0 0.0
        %1937 = vmatpush1.msra.mxu0 0.0
        %1938 = vmatprep.subr.mxu0 0.0
        %1939 = vmatpush1.msra.mxu0 0.0
        %1940 = vmatprep.subr.mxu0 0.0
        %1941 = vmatpush1.msra.mxu0 0.0
        %1942 = vmatprep.subr.mxu0 0.0
        %1943 = vmatpush1.msra.mxu0 %v1910
        %1944 = vmatprep.subr.mxu0 0.0
        %1945 = vmatpush2.msra.mxu0 0.0
        %1946 = vmatprep.subr.mxu0 0.0
        %1947 = vmatpush2.msra.mxu0 0.0
        %1948 = vmatprep.subr.mxu0 0.0
        %1949 = vmatpush2.msra.mxu0 0.0
        %1950 = vmatprep.subr.mxu0 0.0
        %1951 = vmatpush2.msra.mxu0 0.0
        %1952 = vmatprep.subr.mxu0 0.0
        %1953 = vmatpush2.msra.mxu0 0.0
        %1954 = vmatprep.subr.mxu0 0.0
        %1955 = vmatpush2.msra.mxu0 0.0
        %1956 = vmatprep.subr.mxu0 0.0
        %1957 = vmatpush2.msra.mxu0 0.0
        %1958 = vmatprep.subr.mxu0 0.0
        %1959 = vmatpush2.msra.mxu0 0.0
        %1960 = vmatprep.subr.mxu0 0.0
        %1961 = vmatpush2.msra.mxu0 0.0
        %1962 = vmatprep.subr.mxu0 0.0
        %1963 = vmatpush2.msra.mxu0 0.0
        %1964 = vmatprep.subr.mxu0 0.0
        %1965 = vmatpush2.msra.mxu0 0.0
        %1966 = vmatprep.subr.mxu0 0.0
        %1967 = vmatpush2.msra.mxu0 0.0
        %1968 = vmatprep.subr.mxu0 0.0
        %1969 = vmatpush2.msra.mxu0 0.0
        %1970 = vmatprep.subr.mxu0 0.0
        %1971 = vmatpush2.msra.mxu0 0.0
        %1972 = vmatprep.subr.mxu0 0.0
        %1973 = vmatpush2.msra.mxu0 0.0
        %1974 = vmatprep.subr.mxu0 0.0
        %1975 = vmatpush2.msra.mxu0 0.0
        %1976 = vmatprep.mubr.f32.mxu0 0.0
        %1977 = vmatmul.mubr.f32.gmra.mxu0 %v770
        %v1978 = vpop.f32.mrf.mxu0
        %v1979 = vadd.f32 %v328, %v1978
        %v1980 = vpop.f32.mrf.mxu0
        %1981 = vdwg.mxu0
        %v1982 = vmul.f32 %v1979, %v1979
        %v1983 = vsel %vm409, %v1982, 0.0
        %v1984 = vrot.slane %v1983, 4
        %v1985 = vadd.f32 %v1983, %v1984
        %v1986 = vrot.slane %v1985, 2
        %v1987 = vadd.f32 %v1985, %v1986
        %v1988 = vrot.slane %v1987, 1
        %v1989 = vadd.f32 %v1987, %v1988
        %v1990 = vrsqrt.pop %v1989
        %v1991 = vmin.f32 %v1990, 1.0
        %v1992 = vmul.f32 %v1979, %v1991
        %1993 = vmatprep.subr.mxu0 0.0
        %1994 = vmatpush1.msra.mxu0 0.0
        %1995 = vmatprep.subr.mxu0 0.0
        %1996 = vmatpush1.msra.mxu0 0.0
        %1997 = vmatprep.subr.mxu0 0.0
        %1998 = vmatpush1.msra.mxu0 0.0
        %1999 = vmatprep.subr.mxu0 0.0
        %2000 = vmatpush1.msra.mxu0 0.0
        %2001 = vmatprep.subr.mxu0 0.0
        %2002 = vmatpush1.msra.mxu0 0.0
        %2003 = vmatprep.subr.mxu0 0.0
        %2004 = vmatpush1.msra.mxu0 0.0
        %2005 = vmatprep.subr.mxu0 0.0
        %2006 = vmatpush1.msra.mxu0 0.0
        %2007 = vmatprep.subr.mxu0 0.0
        %2008 = vmatpush1.msra.mxu0 0.0
        %2009 = vmatprep.subr.mxu0 0.0
        %2010 = vmatpush1.msra.mxu0 0.0
        %2011 = vmatprep.subr.mxu0 0.0
        %2012 = vmatpush1.msra.mxu0 0.0
        %2013 = vmatprep.subr.mxu0 0.0
        %2014 = vmatpush1.msra.mxu0 0.0
        %2015 = vmatprep.subr.mxu0 0.0
        %2016 = vmatpush1.msra.mxu0 0.0
        %2017 = vmatprep.subr.mxu0 0.0
        %2018 = vmatpush1.msra.mxu0 0.0
        %2019 = vmatprep.subr.mxu0 0.0
        %2020 = vmatpush1.msra.mxu0 0.0
        %2021 = vmatprep.subr.mxu0 0.0
        %2022 = vmatpush1.msra.mxu0 0.0
        %2023 = vmatprep.subr.mxu0 0.0
        %2024 = vmatpush1.msra.mxu0 %v1496
        %2025 = vmatprep.subr.mxu0 0.0
        %2026 = vmatpush2.msra.mxu0 0.0
        %2027 = vmatprep.subr.mxu0 0.0
        %2028 = vmatpush2.msra.mxu0 0.0
        %2029 = vmatprep.subr.mxu0 0.0
        %2030 = vmatpush2.msra.mxu0 0.0
        %2031 = vmatprep.subr.mxu0 0.0
        %2032 = vmatpush2.msra.mxu0 0.0
        %2033 = vmatprep.subr.mxu0 0.0
        %2034 = vmatpush2.msra.mxu0 0.0
        %2035 = vmatprep.subr.mxu0 0.0
        %2036 = vmatpush2.msra.mxu0 0.0
        %2037 = vmatprep.subr.mxu0 0.0
        %2038 = vmatpush2.msra.mxu0 0.0
        %2039 = vmatprep.subr.mxu0 0.0
        %2040 = vmatpush2.msra.mxu0 0.0
        %2041 = vmatprep.subr.mxu0 0.0
        %2042 = vmatpush2.msra.mxu0 0.0
        %2043 = vmatprep.subr.mxu0 0.0
        %2044 = vmatpush2.msra.mxu0 0.0
        %2045 = vmatprep.subr.mxu0 0.0
        %2046 = vmatpush2.msra.mxu0 0.0
        %2047 = vmatprep.subr.mxu0 0.0
        %2048 = vmatpush2.msra.mxu0 0.0
        %2049 = vmatprep.subr.mxu0 0.0
        %2050 = vmatpush2.msra.mxu0 0.0
        %2051 = vmatprep.subr.mxu0 0.0
        %2052 = vmatpush2.msra.mxu0 0.0
        %2053 = vmatprep.subr.mxu0 0.0
        %2054 = vmatpush2.msra.mxu0 0.0
        %2055 = vmatprep.subr.mxu0 0.0
        %2056 = vmatpush2.msra.mxu0 0.0
        %2057 = vmatprep.mubr.f32.mxu0 0.0
        %2058 = vmatmul.mubr.f32.gmra.mxu0 %v857
        %v2059 = vpop.f32.mrf.mxu0
        %v2060 = vadd.f32 0.0, %v2059
        %v2061 = vpop.f32.mrf.mxu0
        %2062 = vdwg.mxu0
        %v2063 = vadd.f32 %v1992, %v2060
        %2064 = vst.msk [vmem:[%s201] sm:$0xff] %vm409, %v2063
        %s2065 = sand.u32 %s120, 1
        %s2066 = scalar_lea.sflag [#allocation3], %s2065
        %s2067 = sand.u32 %s120, 1
        %s2068 = smul.addr %s2067, 8
        %s2069 = scalar_lea.vmem [#allocation2], %s2068
        // Predicated region
        $region37: #{tpu_custom_call.1} parent=35 // pred_check
          %p2070 = pneg %p130
        $region38: #{tpu_custom_call.1} parent=35 // pred_check_branch
          %2072 = sbr.rel (%p2070) target = $region40
        $region39: #{tpu_custom_call.1} parent=35 // pred_region
          %s2074 = ssub.s32 128, 128
          %2075 = vsyncadd %s2066, %s2074
          %s2076 = smul.addr %s18, 128
          %s2077 = scalar_lea.hbm %s4, %s2076
          %s2079 = sshll.u32 %s2069, 4
          %s2080 = int_to_ptr.vmem [resolvable:$true] %s2079
          %2082 = dma.vmem_to_hbm [thread:$0]  %s2080, 128, %s2077, %s2066
        $region40: #{tpu_custom_call.1} parent=35 // pred_fallthru
          _
      $region36: #{tpu_custom_call.1} parent=5 // pred_fallthru
        _
      %p2083 = scmp.le.s32.totalorder 2, %s13
      // Predicated region
      $region41: #{tpu_custom_call.1} parent=5 // pred_check
        %p2084 = pneg %p2083
      $region42: #{tpu_custom_call.1} parent=5 // pred_check_branch
        %2086 = sbr.rel (%p2084) target = $region44
      $region43: #{tpu_custom_call.1} parent=5 // pred_region
        %s2087 = ssub.s32 %s13, 2
        // Predicated region
        $region45: #{tpu_custom_call.1} parent=43 // pred_check
          %p2088 = pneg %p136
        $region46: #{tpu_custom_call.1} parent=43 // pred_check_branch
          %2090 = sbr.rel (%p2088) target = $region48
        $region47: #{tpu_custom_call.1} parent=43 // pred_region
          %s2091 = sand.u32 %s121, 1
          %s2092 = scalar_lea.sflag [#allocation3], %s2091
          %s2093 = sand.u32 %s121, 1
          %s2094 = smul.addr %s2093, 8
          %s2095 = scalar_lea.vmem [#allocation2], %s2094
          %2096 = dma.done %s2092, 128
        $region48: #{tpu_custom_call.1} parent=43 // pred_fallthru
          _
      $region44: #{tpu_custom_call.1} parent=5 // pred_fallthru
        _
    $region6: #{tpu_custom_call.1} parent=1 // loop_footer
      %s17 = sadd.s32 1, %s13
    $region7: #{tpu_custom_call.1} parent=1 // loop_footer_branch
      %12 = sbr.rel target = $region3
    $region8: #{tpu_custom_call.1} parent=1 // loop_exit
      _
    %2097 = vsyncpa [#allocation3], 1
    %s2098 = scalar_lea.sflag [#allocation3], 1
    %2099 = vsyncpa %s2098, 1

</llo_original>
